<compile_context>
chip_gen: v6e
topology: v6e:2x2x1
jax: 0.10.0
libtpu: 0.0.40
codegen_flags: <defaults>
</compile_context>

<pallas_src>
import math

import jax
import jax.numpy as jnp
from jax.experimental import pallas as pl
from jax.experimental.pallas import tpu as pltpu


def _round_up(v, m):
    return ((v + m - 1) // m) * m


def _erf(z):
    # Abramowitz & Stegun 7.1.26 rational approximation (|err| <= 1.5e-7).
    # Built only from mul/add/abs/where/exp so it lowers cleanly in Mosaic
    # (one EUP exp, polynomial on the VPU).
    # NOTE: pl.reciprocal(..., approx=True) for the 1/(1+p|z|) divide was
    # considered (EUP slot is otherwise idle) but the VPU is not the binding
    # unit here and the exact divide keeps erf error at the ~1.5e-7 level.
    a1, a2, a3 = 0.254829592, -0.284496736, 1.421413741
    a4, a5, p = -1.453152027, 1.061405429, 0.3275911
    az = jnp.abs(z)
    t = 1.0 / (1.0 + p * az)
    poly = ((((a5 * t + a4) * t + a3) * t + a2) * t + a1) * t
    e = 1.0 - poly * jnp.exp(-az * az)
    return jnp.where(z >= 0.0, e, -e)


def _gelu_exact(x):
    # torch.nn.GELU() default:  x * 0.5 * (1 + erf(x / sqrt(2)))
    inv_sqrt2 = 0.7071067811865476
    return x * 0.5 * (1.0 + _erf(x * inv_sqrt2))


def mlp_gelu_kernel(x_ref, w1t_ref, b1_ref, w2t_ref, b2_ref, out_ref):
    # layer1: [TM, F] @ [F, H] -> [TM, H]       (MXU, f32 accumulate)
    # Default matmul precision already matches PyTorch f32 to <2e-4 at K=16/32;
    # add precision=jax.lax.Precision.HIGHEST if bit-tight parity is required.
    h = (
        jnp.dot(x_ref[...], w1t_ref[...], preferred_element_type=jnp.float32)
        + b1_ref[...]
    )
    # GELU (exact, erf-based) on the VPU/EUP.
    h = _gelu_exact(h)
    # layer2: [TM, H] @ [H, 128] -> [TM, 128]   (128-lane padding lives in VMEM only)
    res = (
        jnp.dot(h, w2t_ref[...], preferred_element_type=jnp.float32) + b2_ref[...]
    )
    # Store only the real C output columns: HBM-side block is (TM, C), fully
    # contiguous per step -> no 128-lane write amplification in HBM.
    out_ref[...] = res[:, : out_ref.shape[1]].astype(out_ref.dtype)


def faxgnn_oc_forward(x, w1, b1, w2, b2, *, tm=512):
    """x:[N,F]; w1:[H,F], b1:[H], w2:[C,H], b2:[C] (PyTorch nn.Linear layout)."""
    n, f = x.shape
    hdim = w1.shape[0]
    c = w2.shape[0]

    # Lane-pad W2^T / b2 to 128 for the VMEM-side second matmul only; the HBM
    # output stays (N, C).
    c_pad = _round_up(c, 128)

    # Row tile: multiple of 8 sublanes, never larger than the problem, and
    # (when n allows) capped at ~n/2 so the grid has >= 2 "parallel" steps for
    # v7x's two TensorCores.  Large n keeps the requested tm (default 512).
    half = max(8, _round_up((n + 1) // 2, 8))
    tm = max(8, min(tm, _round_up(n, 8), half))

    w1t = w1.T.astype(jnp.float32)                                        # [F, H]
    b1r = b1.reshape(1, hdim).astype(jnp.float32)                         # [1, H]
    w2t_pad = jnp.zeros((hdim, c_pad), jnp.float32).at[:, :c].set(w2.T)   # [H, 128]
    b2_pad = jnp.zeros((1, c_pad), jnp.float32).at[:, :c].set(b2.reshape(1, c))

    grid = (pl.cdiv(n, tm),)   # no host-side row padding; ragged tail is masked
    return pl.pallas_call(
        mlp_gelu_kernel,
        out_shape=jax.ShapeDtypeStruct((n, c), jnp.float32),
        grid=grid,
        in_specs=[
            pl.BlockSpec((tm, f), lambda i: (i, 0)),        # x row tile (pipelined)
            # Constant index_maps -> fetched once, VMEM-resident across the grid.
            pl.BlockSpec((f, hdim), lambda i: (0, 0)),      # W1^T
            pl.BlockSpec((1, hdim), lambda i: (0, 0)),      # b1
            pl.BlockSpec((hdim, c_pad), lambda i: (0, 0)),  # W2^T, lane-padded (VMEM)
            pl.BlockSpec((1, c_pad), lambda i: (0, 0)),     # b2,   lane-padded (VMEM)
        ],
        out_specs=pl.BlockSpec((tm, c), lambda i: (i, 0)),  # unpadded (TM, C) store
        compiler_params=pltpu.CompilerParams(
            dimension_semantics=("parallel",),              # shard rows across TCs
        ),
    )(x.astype(jnp.float32), w1t, b1r, w2t_pad, b2_pad)


def init_params(key, input_dim, hidden_dim, output_dim):
    """Mirror PyTorch nn.Linear default init: U(-1/sqrt(fan_in), 1/sqrt(fan_in))."""
    k1, k2, k3, k4 = jax.random.split(key, 4)
    bound1 = 1.0 / math.sqrt(input_dim)
    w1 = jax.random.uniform(k1, (hidden_dim, input_dim), jnp.float32, -bound1, bound1)
    b1 = jax.random.uniform(k2, (hidden_dim,), jnp.float32, -bound1, bound1)
    bound2 = 1.0 / math.sqrt(hidden_dim)
    w2 = jax.random.uniform(k3, (output_dim, hidden_dim), jnp.float32, -bound2, bound2)
    b2 = jax.random.uniform(k4, (output_dim,), jnp.float32, -bound2, bound2)
    return w1, b1, w2, b2


if __name__ == "__main__":
    key = jax.random.PRNGKey(0)
    N, INPUT_DIM, HIDDEN_DIM, OUTPUT_DIM = 512, 16, 32, 4

    kx, kp = jax.random.split(key)
    x = jax.random.normal(kx, (N, INPUT_DIM), jnp.float32)
    w1, b1, w2, b2 = init_params(kp, INPUT_DIM, HIDDEN_DIM, OUTPUT_DIM)

    out = faxgnn_oc_forward(x, w1, b1, w2, b2)
    out = jax.block_until_ready(out)

    # Pure-JAX reference (exact erf GELU, matching torch.nn.GELU() default).
    h_ref = x @ w1.T + b1
    h_ref = jax.nn.gelu(h_ref, approximate=False)
    ref = h_ref @ w2.T + b2

    assert out.shape == (N, OUTPUT_DIM)
    assert jnp.allclose(out, ref, atol=2e-4, rtol=2e-4), "mismatch vs reference"

    print("KERNEL_OK")
</pallas_src>

<mosaic_0001>
module attributes {stable_mosaic.version = 11 : i64} {
  func.func @mlp_gelu_kernel(%arg0: i32, %arg1: memref<256x16xf32, #tpu.memory_space<vmem>>, %arg2: memref<16x32xf32, #tpu.memory_space<vmem>>, %arg3: memref<1x32xf32, #tpu.memory_space<vmem>>, %arg4: memref<32x128xf32, #tpu.memory_space<vmem>>, %arg5: memref<1x128xf32, #tpu.memory_space<vmem>>, %arg6: memref<256x4xf32, #tpu.memory_space<vmem>>) attributes {dimension_semantics = [#tpu.dimension_semantics<parallel>], iteration_bounds = array<i64: 2>, scalar_prefetch = 0 : i64, scratch_operands = 0 : i64, tpu.core_type = #tpu.core_type<tc>, window_params = [{transform_indices = @transform_0, window_bounds = array<i64: 256, 16>}, {pipeline_mode = #tpu.pipeline_mode<synchronous>, transform_indices = @transform_1, window_bounds = array<i64: 16, 32>}, {pipeline_mode = #tpu.pipeline_mode<synchronous>, transform_indices = @transform_2, window_bounds = array<i64: 1, 32>}, {pipeline_mode = #tpu.pipeline_mode<synchronous>, transform_indices = @transform_3, window_bounds = array<i64: 32, 128>}, {pipeline_mode = #tpu.pipeline_mode<synchronous>, transform_indices = @transform_4, window_bounds = array<i64: 1, 128>}, {transform_indices = @transform_5, window_bounds = array<i64: 256, 4>}]} {
    %c0 = arith.constant 0 : index
    %c0_0 = arith.constant 0 : index
    %0 = vector.load %arg1[%c0, %c0_0] : memref<256x16xf32, #tpu.memory_space<vmem>>, vector<256x16xf32>
    %c0_1 = arith.constant 0 : index
    %c0_2 = arith.constant 0 : index
    %1 = vector.load %arg2[%c0_1, %c0_2] : memref<16x32xf32, #tpu.memory_space<vmem>>, vector<16x32xf32>
    %cst = arith.constant dense<0.000000e+00> : vector<256x32xf32>
    %2 = tpu.matmul %0, %1, %cst {dimension_numbers = #tpu.dot_dimension_numbers<[1], [0], [0], [1], [0, 0, 1, 1], [], []>} : vector<256x16xf32>, vector<16x32xf32>, vector<256x32xf32> -> vector<256x32xf32>
    %c0_3 = arith.constant 0 : index
    %c0_4 = arith.constant 0 : index
    %3 = vector.load %arg3[%c0_3, %c0_4] : memref<1x32xf32, #tpu.memory_space<vmem>>, vector<1x32xf32>
    %4 = vector.broadcast %3 : vector<1x32xf32> to vector<256x32xf32>
    %5 = arith.addf %2, %4 : vector<256x32xf32>
    %cst_5 = arith.constant 5.000000e-01 : f32
    %6 = vector.broadcast %cst_5 : f32 to vector<256x32xf32>
    %7 = arith.mulf %5, %6 : vector<256x32xf32>
    %cst_6 = arith.constant 0.707106769 : f32
    %8 = vector.broadcast %cst_6 : f32 to vector<256x32xf32>
    %9 = arith.mulf %5, %8 : vector<256x32xf32>
    %10 = math.absf %9 : vector<256x32xf32>
    %cst_7 = arith.constant 0.327591091 : f32
    %11 = vector.broadcast %cst_7 : f32 to vector<256x32xf32>
    %12 = arith.mulf %11, %10 : vector<256x32xf32>
    %cst_8 = arith.constant 1.000000e+00 : f32
    %13 = vector.broadcast %cst_8 : f32 to vector<256x32xf32>
    %14 = arith.addf %13, %12 : vector<256x32xf32>
    %cst_9 = arith.constant 1.000000e+00 : f32
    %15 = vector.broadcast %cst_9 : f32 to vector<256x32xf32>
    %16 = arith.divf %15, %14 : vector<256x32xf32>
    %cst_10 = arith.constant 1.06140542 : f32
    %17 = vector.broadcast %cst_10 : f32 to vector<256x32xf32>
    %18 = arith.mulf %17, %16 : vector<256x32xf32>
    %cst_11 = arith.constant -1.45315206 : f32
    %19 = vector.broadcast %cst_11 : f32 to vector<256x32xf32>
    %20 = arith.addf %18, %19 : vector<256x32xf32>
    %21 = arith.mulf %20, %16 : vector<256x32xf32>
    %cst_12 = arith.constant 1.42141378 : f32
    %22 = vector.broadcast %cst_12 : f32 to vector<256x32xf32>
    %23 = arith.addf %21, %22 : vector<256x32xf32>
    %24 = arith.mulf %23, %16 : vector<256x32xf32>
    %cst_13 = arith.constant -0.284496725 : f32
    %25 = vector.broadcast %cst_13 : f32 to vector<256x32xf32>
    %26 = arith.addf %24, %25 : vector<256x32xf32>
    %27 = arith.mulf %26, %16 : vector<256x32xf32>
    %cst_14 = arith.constant 0.254829586 : f32
    %28 = vector.broadcast %cst_14 : f32 to vector<256x32xf32>
    %29 = arith.addf %27, %28 : vector<256x32xf32>
    %30 = arith.mulf %29, %16 : vector<256x32xf32>
    %cst_15 = arith.constant 0.000000e+00 : f32
    %31 = vector.broadcast %cst_15 : f32 to vector<256x32xf32>
    %32 = arith.subf %31, %10 : vector<256x32xf32>
    %33 = arith.mulf %32, %10 : vector<256x32xf32>
    %34 = math.exp %33 : vector<256x32xf32>
    %35 = arith.mulf %30, %34 : vector<256x32xf32>
    %cst_16 = arith.constant 1.000000e+00 : f32
    %36 = vector.broadcast %cst_16 : f32 to vector<256x32xf32>
    %37 = arith.subf %36, %35 : vector<256x32xf32>
    %cst_17 = arith.constant 0.000000e+00 : f32
    %38 = vector.broadcast %cst_17 : f32 to vector<256x32xf32>
    %39 = arith.cmpf oge, %9, %38 : vector<256x32xf32>
    %cst_18 = arith.constant 0.000000e+00 : f32
    %40 = vector.broadcast %cst_18 : f32 to vector<256x32xf32>
    %41 = arith.subf %40, %37 : vector<256x32xf32>
    %42 = arith.select %39, %37, %41 : vector<256x32xi1>, vector<256x32xf32>
    %cst_19 = arith.constant 1.000000e+00 : f32
    %43 = vector.broadcast %cst_19 : f32 to vector<256x32xf32>
    %44 = arith.addf %43, %42 : vector<256x32xf32>
    %45 = arith.mulf %7, %44 : vector<256x32xf32>
    %c0_20 = arith.constant 0 : index
    %c0_21 = arith.constant 0 : index
    %46 = vector.load %arg4[%c0_20, %c0_21] : memref<32x128xf32, #tpu.memory_space<vmem>>, vector<32x128xf32>
    %cst_22 = arith.constant dense<0.000000e+00> : vector<256x128xf32>
    %47 = tpu.matmul %45, %46, %cst_22 {dimension_numbers = #tpu.dot_dimension_numbers<[1], [0], [0], [1], [0, 0, 1, 1], [], []>} : vector<256x32xf32>, vector<32x128xf32>, vector<256x128xf32> -> vector<256x128xf32>
    %c0_23 = arith.constant 0 : index
    %c0_24 = arith.constant 0 : index
    %48 = vector.load %arg5[%c0_23, %c0_24] : memref<1x128xf32, #tpu.memory_space<vmem>>, vector<1x128xf32>
    %49 = vector.broadcast %48 : vector<1x128xf32> to vector<256x128xf32>
    %50 = arith.addf %47, %49 : vector<256x128xf32>
    %51 = vector.extract_strided_slice %50 {offsets = [0, 0], sizes = [256, 4], strides = [1, 1]} : vector<256x128xf32> to vector<256x4xf32>
    %c0_25 = arith.constant 0 : index
    %c0_26 = arith.constant 0 : index
    %52 = vector.load %arg6[%c0_25, %c0_26] : memref<256x4xf32, #tpu.memory_space<vmem>>, vector<256x4xf32>
    tpu.vector_store %arg6[%c0_25, %c0_26], %51 {strides = array<i32>} : memref<256x4xf32, #tpu.memory_space<vmem>>, vector<256x4xf32>,
    return
  }
  func.func @transform_0(%arg0: i32) -> (i32, i32) {
    %c0_i32 = arith.constant 0 : i32
    %c0_i32_0 = arith.constant 0 : i32
    return %arg0, %c0_i32 : i32, i32
  }
  func.func @transform_1(%arg0: i32) -> (i32, i32) {
    %c0_i32 = arith.constant 0 : i32
    %c0_i32_0 = arith.constant 0 : i32
    %c0_i32_1 = arith.constant 0 : i32
    return %c0_i32, %c0_i32_0 : i32, i32
  }
  func.func @transform_2(%arg0: i32) -> (i32, i32) {
    %c0_i32 = arith.constant 0 : i32
    %c0_i32_0 = arith.constant 0 : i32
    %c0_i32_1 = arith.constant 0 : i32
    return %c0_i32, %c0_i32_0 : i32, i32
  }
  func.func @transform_3(%arg0: i32) -> (i32, i32) {
    %c0_i32 = arith.constant 0 : i32
    %c0_i32_0 = arith.constant 0 : i32
    %c0_i32_1 = arith.constant 0 : i32
    return %c0_i32, %c0_i32_0 : i32, i32
  }
  func.func @transform_4(%arg0: i32) -> (i32, i32) {
    %c0_i32 = arith.constant 0 : i32
    %c0_i32_0 = arith.constant 0 : i32
    %c0_i32_1 = arith.constant 0 : i32
    return %c0_i32, %c0_i32_0 : i32, i32
  }
  func.func @transform_5(%arg0: i32) -> (i32, i32) {
    %c0_i32 = arith.constant 0 : i32
    %c0_i32_0 = arith.constant 0 : i32
    return %arg0, %c0_i32 : i32, i32
  }
}

</mosaic_0001>

<llo_original>
// kernel: tpu_custom_call.1
$region0: #{tpu_custom_call.1}
  #allocation0 [shape = 'u32[]', space=smem, size = 0x4, offset = 0x4, fixed_abs, tag = 'smem constant byte address 0x4 - core index']
  #allocation1 [shape = 'u32[144,128]{1,0:T(1,128)}', space=vmem, size = 0x12000, scoped, tag = 'internal scratch']
  %s0 = inlined_call_operand.vmem [shape: f32[512,16], index: 0, kind: input, shape index: {}]
  %s1 = inlined_call_operand.vmem [shape: f32[16,32], index: 1, kind: input, shape index: {}]
  %s2 = inlined_call_operand.vmem [shape: f32[1,32], index: 2, kind: input, shape index: {}]
  %s3 = inlined_call_operand.vmem [shape: f32[32,128], index: 3, kind: input, shape index: {}]
  %s4 = inlined_call_operand.vmem [shape: f32[1,128], index: 4, kind: input, shape index: {}]
  %s5 = inlined_call_operand.vmem [shape: f32[512,4], index: 5, kind: output, shape index: {}]
  %s6 = sld [smem:[#allocation0]]
  $region53: #{tpu_custom_call.1} parent=0
    _
  %s8 = ssub.s32 1, %s6
  %s9 = scalar_select 0, %s8, %s6
  loop: start=0, step=1, limit=4
  $region2: #{tpu_custom_call.1} parent=0 // loop_pre_header
    _
  $region3: #{tpu_custom_call.1} parent=0 // loop_header
    %s11 = sphi 0, %s15
    %p12 = scmp.ge.s32.totalorder %s11, 4
    %s21 = sphi 0, %s23
    %s24 = sphi 0, %s21
    %s25 = sphi 0, %s24
    %s41 = sphi 0, %s25
    %s45 = sphi 0, %s45
    %s47 = sphi 0, %s45
    %s48 = sphi 0, %s47
    %s62 = sphi 0, %s48
    %s66 = sphi 0, %s66
    %s68 = sphi 0, %s66
    %s69 = sphi 0, %s68
    %s83 = sphi 0, %s69
    %s87 = sphi 0, %s87
    %s89 = sphi 0, %s87
    %s90 = sphi 0, %s89
    %s104 = sphi 0, %s90
    %s108 = sphi 0, %s108
    %s110 = sphi 0, %s108
    %s111 = sphi 0, %s110
    %s125 = sphi 0, %s111
    %s131 = sphi 0, %s133
    %s134 = sphi 0, %s131
    %s135 = sphi 0, %s134
    %s151 = sphi 0, %s135
  $region4: #{tpu_custom_call.1} parent=0 // loop_header_branch
    %14 = sbr.rel (%p12) target = $region8
  $region5: #{tpu_custom_call.1} parent=0 // loop_body
    %s16 = ssub.s32 %s11, 1
    %s17 = ssub.s32 %s11, 2
    %s18 = sadd.s32 %s11, 1
    %s19 = ssub.s32 %s11, %s18
    %p20 = scmp.eq.s32.totalorder %s19, 0
    %s22 = sadd.s32 %s21, 1
    %s23 = scalar_select %p20, %s21, %s22
    %p26 = pneg %p20
    %p27 = scmp.eq.s32.totalorder %s11, 1
    %p28 = por %p26, %p27
    %p29 = scmp.ne.s32.totalorder %s21, %s24
    %p30 = scmp.eq.s32.totalorder %s11, 0
    %p31 = por %p29, %p30
    %p32 = scmp.ne.s32.totalorder %s21, %s24
    %p33 = scmp.eq.s32.totalorder %s16, 1
    %p34 = por %p32, %p33
    %p35 = scmp.ne.s32.totalorder %s24, %s25
    %p36 = scmp.eq.s32.totalorder %s16, 0
    %p37 = por %p35, %p36
    %p38 = scmp.ne.s32.totalorder %s24, %s25
    %p39 = scmp.eq.s32.totalorder %s17, 1
    %p40 = por %p38, %p39
    %p42 = scmp.ne.s32.totalorder %s25, %s41
    %p43 = scmp.eq.s32.totalorder %s17, 0
    %p44 = por %p42, %p43
    %s46 = sadd.s32 %s45, 1
    %p49 = scmp.eq.s32.totalorder %s11, 1
    %p50 = scmp.ne.s32.totalorder %s45, %s47
    %p51 = scmp.eq.s32.totalorder %s11, 0
    %p52 = por %p50, %p51
    %p53 = scmp.ne.s32.totalorder %s45, %s47
    %p54 = scmp.eq.s32.totalorder %s16, 1
    %p55 = por %p53, %p54
    %p56 = scmp.ne.s32.totalorder %s47, %s48
    %p57 = scmp.eq.s32.totalorder %s16, 0
    %p58 = por %p56, %p57
    %p59 = scmp.ne.s32.totalorder %s47, %s48
    %p60 = scmp.eq.s32.totalorder %s17, 1
    %p61 = por %p59, %p60
    %p63 = scmp.ne.s32.totalorder %s48, %s62
    %p64 = scmp.eq.s32.totalorder %s17, 0
    %p65 = por %p63, %p64
    %s67 = sadd.s32 %s66, 1
    %p70 = scmp.eq.s32.totalorder %s11, 1
    %p71 = scmp.ne.s32.totalorder %s66, %s68
    %p72 = scmp.eq.s32.totalorder %s11, 0
    %p73 = por %p71, %p72
    %p74 = scmp.ne.s32.totalorder %s66, %s68
    %p75 = scmp.eq.s32.totalorder %s16, 1
    %p76 = por %p74, %p75
    %p77 = scmp.ne.s32.totalorder %s68, %s69
    %p78 = scmp.eq.s32.totalorder %s16, 0
    %p79 = por %p77, %p78
    %p80 = scmp.ne.s32.totalorder %s68, %s69
    %p81 = scmp.eq.s32.totalorder %s17, 1
    %p82 = por %p80, %p81
    %p84 = scmp.ne.s32.totalorder %s69, %s83
    %p85 = scmp.eq.s32.totalorder %s17, 0
    %p86 = por %p84, %p85
    %s88 = sadd.s32 %s87, 1
    %p91 = scmp.eq.s32.totalorder %s11, 1
    %p92 = scmp.ne.s32.totalorder %s87, %s89
    %p93 = scmp.eq.s32.totalorder %s11, 0
    %p94 = por %p92, %p93
    %p95 = scmp.ne.s32.totalorder %s87, %s89
    %p96 = scmp.eq.s32.totalorder %s16, 1
    %p97 = por %p95, %p96
    %p98 = scmp.ne.s32.totalorder %s89, %s90
    %p99 = scmp.eq.s32.totalorder %s16, 0
    %p100 = por %p98, %p99
    %p101 = scmp.ne.s32.totalorder %s89, %s90
    %p102 = scmp.eq.s32.totalorder %s17, 1
    %p103 = por %p101, %p102
    %p105 = scmp.ne.s32.totalorder %s90, %s104
    %p106 = scmp.eq.s32.totalorder %s17, 0
    %p107 = por %p105, %p106
    %s109 = sadd.s32 %s108, 1
    %p112 = scmp.eq.s32.totalorder %s11, 1
    %p113 = scmp.ne.s32.totalorder %s108, %s110
    %p114 = scmp.eq.s32.totalorder %s11, 0
    %p115 = por %p113, %p114
    %p116 = scmp.ne.s32.totalorder %s108, %s110
    %p117 = scmp.eq.s32.totalorder %s16, 1
    %p118 = por %p116, %p117
    %p119 = scmp.ne.s32.totalorder %s110, %s111
    %p120 = scmp.eq.s32.totalorder %s16, 0
    %p121 = por %p119, %p120
    %p122 = scmp.ne.s32.totalorder %s110, %s111
    %p123 = scmp.eq.s32.totalorder %s17, 1
    %p124 = por %p122, %p123
    %p126 = scmp.ne.s32.totalorder %s111, %s125
    %p127 = scmp.eq.s32.totalorder %s17, 0
    %p128 = por %p126, %p127
    %s129 = ssub.s32 %s11, %s18
    %p130 = scmp.eq.s32.totalorder %s129, 0
    %s132 = sadd.s32 %s131, 1
    %s133 = scalar_select %p130, %s131, %s132
    %p136 = pneg %p130
    %p137 = scmp.eq.s32.totalorder %s11, 1
    %p138 = por %p136, %p137
    %p139 = scmp.ne.s32.totalorder %s131, %s134
    %p140 = scmp.eq.s32.totalorder %s11, 0
    %p141 = por %p139, %p140
    %p142 = scmp.ne.s32.totalorder %s131, %s134
    %p143 = scmp.eq.s32.totalorder %s16, 1
    %p144 = por %p142, %p143
    %p145 = scmp.ne.s32.totalorder %s134, %s135
    %p146 = scmp.eq.s32.totalorder %s16, 0
    %p147 = por %p145, %p146
    %p148 = scmp.ne.s32.totalorder %s134, %s135
    %p149 = scmp.eq.s32.totalorder %s17, 1
    %p150 = por %p148, %p149
    %p152 = scmp.ne.s32.totalorder %s135, %s151
    %p153 = scmp.eq.s32.totalorder %s17, 0
    %p154 = por %p152, %p153
    %p155 = scmp.le.s32.totalorder 1, %s11
    %p156 = scmp.lt.s32.totalorder %s11, 3
    %p157 = pnand %p155, %p156
    %p158 = pneg %p157
    // Predicated region
    $region9: #{tpu_custom_call.1} parent=5 // pred_check
      _
    $region10: #{tpu_custom_call.1} parent=5 // pred_check_branch
      %160 = sbr.rel (%p157) target = $region12
    $region11: #{tpu_custom_call.1} parent=5 // pred_region
      %s161 = ssub.s32 %s11, 1
      // Predicated region
      $region13: #{tpu_custom_call.1} parent=11 // pred_check
        %p162 = pneg %p58
      $region14: #{tpu_custom_call.1} parent=11 // pred_check_branch
        %164 = sbr.rel (%p162) target = $region16
      $region15: #{tpu_custom_call.1} parent=11 // pred_region
        _
      $region16: #{tpu_custom_call.1} parent=11 // pred_fallthru
        _
      // Predicated region
      $region17: #{tpu_custom_call.1} parent=11 // pred_check
        %p165 = pneg %p79
      $region18: #{tpu_custom_call.1} parent=11 // pred_check_branch
        %167 = sbr.rel (%p165) target = $region20
      $region19: #{tpu_custom_call.1} parent=11 // pred_region
        _
      $region20: #{tpu_custom_call.1} parent=11 // pred_fallthru
        _
      // Predicated region
      $region21: #{tpu_custom_call.1} parent=11 // pred_check
        %p168 = pneg %p100
      $region22: #{tpu_custom_call.1} parent=11 // pred_check_branch
        %170 = sbr.rel (%p168) target = $region24
      $region23: #{tpu_custom_call.1} parent=11 // pred_region
        _
      $region24: #{tpu_custom_call.1} parent=11 // pred_fallthru
        _
      // Predicated region
      $region25: #{tpu_custom_call.1} parent=11 // pred_check
        %p171 = pneg %p121
      $region26: #{tpu_custom_call.1} parent=11 // pred_check_branch
        %173 = sbr.rel (%p171) target = $region28
      $region27: #{tpu_custom_call.1} parent=11 // pred_region
        _
      $region28: #{tpu_custom_call.1} parent=11 // pred_fallthru
        _
    $region12: #{tpu_custom_call.1} parent=5 // pred_fallthru
      _
    %p174 = scmp.lt.s32.totalorder %s11, 2
    // Predicated region
    $region29: #{tpu_custom_call.1} parent=5 // pred_check
      %p175 = pneg %p174
    $region30: #{tpu_custom_call.1} parent=5 // pred_check_branch
      %177 = sbr.rel (%p175) target = $region32
    $region31: #{tpu_custom_call.1} parent=5 // pred_region
      // Predicated region
      $region33: #{tpu_custom_call.1} parent=31 // pred_check
        %p178 = pneg %p31
      $region34: #{tpu_custom_call.1} parent=31 // pred_check_branch
        %180 = sbr.rel (%p178) target = $region36
      $region35: #{tpu_custom_call.1} parent=31 // pred_region
        %s181 = smul.u32 32, %s11
        %p182 = scmp.lt.s32.totalorder %s181, 63
        %s183 = scalar_select %p182, %s181, 63
        %s184 = smul.addr %s183, 8
        %s185 = scalar_lea.vmem %s0, %s184
        %s186 = smul.u32 32, %s11
      $region36: #{tpu_custom_call.1} parent=31 // pred_fallthru
        _
    $region32: #{tpu_custom_call.1} parent=5 // pred_fallthru
      _
    %p187 = scmp.le.s32.totalorder 1, %s11
    %p188 = scmp.lt.s32.totalorder %s11, 3
    %p189 = pnand %p187, %p188
    %p190 = pneg %p189
    // Predicated region
    $region37: #{tpu_custom_call.1} parent=5 // pred_check
      _
    $region38: #{tpu_custom_call.1} parent=5 // pred_check_branch
      %192 = sbr.rel (%p189) target = $region40
    $region39: #{tpu_custom_call.1} parent=5 // pred_region
      %s193 = ssub.s32 %s11, 1
      %s194 = smul.u32 32, %s16
      %p195 = scmp.lt.s32.totalorder %s194, 63
      %s196 = scalar_select %p195, %s194, 63
      %s197 = smul.addr %s196, 8
      %s198 = scalar_lea.vmem %s0, %s197
      %p199 = pneg %p37
      %p200 = pneg %p34
      %p201 = pneg %p58
      %p202 = pneg %p55
      %p203 = pneg %p79
      %p204 = pneg %p76
      %p205 = pneg %p100
      %p206 = pneg %p97
      %p207 = pneg %p121
      %p208 = pneg %p118
      %p209 = pneg %p147
      %p210 = pneg %p144
      %s211 = smul.u32 32, %s16
      %p212 = scmp.lt.s32.totalorder %s211, 63
      %s213 = scalar_select %p212, %s211, 63
      %s214 = smul.addr %s213, 8
      %s215 = scalar_lea.vmem %s5, %s214
      %s216 = smul.u32 32, %s16
      %p217 = scmp.lt.s32.totalorder %s216, 63
      %s218 = scalar_select %p217, %s216, 63
      %s219 = smul.addr %s218, 8
      %s220 = scalar_lea.vmem %s0, %s219
      %s221 = smul.u32 32, %s16
      %s222 = smul.u32 32, %s16
      %p223 = scmp.lt.s32.totalorder %s222, 63
      %s224 = scalar_select %p223, %s222, 63
      %s225 = smul.addr %s224, 8
      %s226 = scalar_lea.vmem %s5, %s225
      %s227 = smul.u32 32, %s16
      %v228 = vld [vmem:[%s220] sm:$0xff]
      %v229 = vld [vmem:[%s220 + $0x8] sm:$0xff]
      %v230 = vld [vmem:[%s220 + $0x10] sm:$0xff]
      %v231 = vld [vmem:[%s220 + $0x18] sm:$0xff]
      %v232 = vld [vmem:[%s220 + $0x20] sm:$0xff]
      %v233 = vld [vmem:[%s220 + $0x28] sm:$0xff]
      %v234 = vld [vmem:[%s220 + $0x30] sm:$0xff]
      %v235 = vld [vmem:[%s220 + $0x38] sm:$0xff]
      %v236 = vld [vmem:[%s220 + $0x40] sm:$0xff]
      %v237 = vld [vmem:[%s220 + $0x48] sm:$0xff]
      %v238 = vld [vmem:[%s220 + $0x50] sm:$0xff]
      %v239 = vld [vmem:[%s220 + $0x58] sm:$0xff]
      %v240 = vld [vmem:[%s220 + $0x60] sm:$0xff]
      %v241 = vld [vmem:[%s220 + $0x68] sm:$0xff]
      %v242 = vld [vmem:[%s220 + $0x70] sm:$0xff]
      %v243 = vld [vmem:[%s220 + $0x78] sm:$0xff]
      %v244 = vld [vmem:[%s220 + $0x80] sm:$0xff]
      %v245 = vld [vmem:[%s220 + $0x88] sm:$0xff]
      %v246 = vld [vmem:[%s220 + $0x90] sm:$0xff]
      %v247 = vld [vmem:[%s220 + $0x98] sm:$0xff]
      %v248 = vld [vmem:[%s220 + $0xa0] sm:$0xff]
      %v249 = vld [vmem:[%s220 + $0xa8] sm:$0xff]
      %v250 = vld [vmem:[%s220 + $0xb0] sm:$0xff]
      %v251 = vld [vmem:[%s220 + $0xb8] sm:$0xff]
      %v252 = vld [vmem:[%s220 + $0xc0] sm:$0xff]
      %v253 = vld [vmem:[%s220 + $0xc8] sm:$0xff]
      %v254 = vld [vmem:[%s220 + $0xd0] sm:$0xff]
      %v255 = vld [vmem:[%s220 + $0xd8] sm:$0xff]
      %v256 = vld [vmem:[%s220 + $0xe0] sm:$0xff]
      %v257 = vld [vmem:[%s220 + $0xe8] sm:$0xff]
      %v258 = vld [vmem:[%s220 + $0xf0] sm:$0xff]
      %v259 = vld [vmem:[%s220 + $0xf8] sm:$0xff]
      %v260 = vld [vmem:[%s1] sm:$0xff]
      %v261 = vld [vmem:[%s1 + $0x8] sm:$0xff]
      %v262 = vld [vmem:[%s2] sm:$0x1]
      %v264 = vlaneseq
      %v265 = vshrl.u32 %v264, 7
      %v266 = vsub.s32 0, %v265
      %v267 = vrot.slane %v262, %v266
      %vm269 = vcmask 130048
      %v271 = vsel %vm269, %v228, 0
      %v274 = vsel %vm269, %v229, 0
      %v277 = vsel %vm269, %v230, 0
      %v280 = vsel %vm269, %v231, 0
      %v283 = vsel %vm269, %v232, 0
      %v286 = vsel %vm269, %v233, 0
      %v289 = vsel %vm269, %v234, 0
      %v292 = vsel %vm269, %v235, 0
      %v295 = vsel %vm269, %v236, 0
      %v298 = vsel %vm269, %v237, 0
      %v301 = vsel %vm269, %v238, 0
      %v304 = vsel %vm269, %v239, 0
      %v307 = vsel %vm269, %v240, 0
      %v310 = vsel %vm269, %v241, 0
      %v313 = vsel %vm269, %v242, 0
      %v316 = vsel %vm269, %v243, 0
      %v319 = vsel %vm269, %v244, 0
      %v322 = vsel %vm269, %v245, 0
      %v325 = vsel %vm269, %v246, 0
      %v328 = vsel %vm269, %v247, 0
      %v331 = vsel %vm269, %v248, 0
      %v334 = vsel %vm269, %v249, 0
      %v337 = vsel %vm269, %v250, 0
      %v340 = vsel %vm269, %v251, 0
      %v343 = vsel %vm269, %v252, 0
      %v346 = vsel %vm269, %v253, 0
      %v349 = vsel %vm269, %v254, 0
      %v352 = vsel %vm269, %v255, 0
      %v355 = vsel %vm269, %v256, 0
      %v358 = vsel %vm269, %v257, 0
      %v361 = vsel %vm269, %v258, 0
      %v364 = vsel %vm269, %v259, 0
      %366 = vmatprep.subr.mxu0 0.0
      %367 = vmatpush1.msra.mxu0 0.0
      %368 = vmatprep.subr.mxu0 0.0
      %369 = vmatpush1.msra.mxu0 0.0
      %370 = vmatprep.subr.mxu0 0.0
      %371 = vmatpush1.msra.mxu0 0.0
      %372 = vmatprep.subr.mxu0 0.0
      %373 = vmatpush1.msra.mxu0 0.0
      %374 = vmatprep.subr.mxu0 0.0
      %375 = vmatpush1.msra.mxu0 0.0
      %376 = vmatprep.subr.mxu0 0.0
      %377 = vmatpush1.msra.mxu0 0.0
      %378 = vmatprep.subr.mxu0 0.0
      %379 = vmatpush1.msra.mxu0 0.0
      %380 = vmatprep.subr.mxu0 0.0
      %381 = vmatpush1.msra.mxu0 0.0
      %382 = vmatprep.subr.mxu0 0.0
      %383 = vmatpush1.msra.mxu0 0.0
      %384 = vmatprep.subr.mxu0 0.0
      %385 = vmatpush1.msra.mxu0 0.0
      %386 = vmatprep.subr.mxu0 0.0
      %387 = vmatpush1.msra.mxu0 0.0
      %388 = vmatprep.subr.mxu0 0.0
      %389 = vmatpush1.msra.mxu0 0.0
      %390 = vmatprep.subr.mxu0 0.0
      %391 = vmatpush1.msra.mxu0 0.0
      %392 = vmatprep.subr.mxu0 0.0
      %393 = vmatpush1.msra.mxu0 0.0
      %394 = vmatprep.subr.mxu0 0.0
      %395 = vmatpush1.msra.mxu0 %v261
      %396 = vmatprep.subr.mxu0 0.0
      %397 = vmatpush1.msra.mxu0 %v260
      %398 = vmatprep.subr.mxu0 0.0
      %399 = vmatpush2.msra.mxu0 0.0
      %400 = vmatprep.subr.mxu0 0.0
      %401 = vmatpush2.msra.mxu0 0.0
      %402 = vmatprep.subr.mxu0 0.0
      %403 = vmatpush2.msra.mxu0 0.0
      %404 = vmatprep.subr.mxu0 0.0
      %405 = vmatpush2.msra.mxu0 0.0
      %406 = vmatprep.subr.mxu0 0.0
      %407 = vmatpush2.msra.mxu0 0.0
      %408 = vmatprep.subr.mxu0 0.0
      %409 = vmatpush2.msra.mxu0 0.0
      %410 = vmatprep.subr.mxu0 0.0
      %411 = vmatpush2.msra.mxu0 0.0
      %412 = vmatprep.subr.mxu0 0.0
      %413 = vmatpush2.msra.mxu0 0.0
      %414 = vmatprep.subr.mxu0 0.0
      %415 = vmatpush2.msra.mxu0 0.0
      %416 = vmatprep.subr.mxu0 0.0
      %417 = vmatpush2.msra.mxu0 0.0
      %418 = vmatprep.subr.mxu0 0.0
      %419 = vmatpush2.msra.mxu0 0.0
      %420 = vmatprep.subr.mxu0 0.0
      %421 = vmatpush2.msra.mxu0 0.0
      %422 = vmatprep.subr.mxu0 0.0
      %423 = vmatpush2.msra.mxu0 0.0
      %424 = vmatprep.subr.mxu0 0.0
      %425 = vmatpush2.msra.mxu0 0.0
      %426 = vmatprep.subr.mxu0 0.0
      %427 = vmatpush2.msra.mxu0 0.0
      %428 = vmatprep.subr.mxu0 0.0
      %429 = vmatpush2.msra.mxu0 0.0
      %430 = vmatprep.mubr.f32.mxu0 0.0
      %431 = vmatmul.mubr.f32.gmra.mxu0 %v271
      %v432 = vpop.f32.mrf.mxu0
      %v433 = vadd.f32 %v267, %v432
      %v434 = vpop.f32.mrf.mxu0
      %435 = vmatprep.mubr.f32.mxu0 0.0
      %436 = vmatmul.mubr.f32.gmra.mxu0 %v274
      %v437 = vpop.f32.mrf.mxu0
      %v438 = vadd.f32 %v267, %v437
      %v439 = vpop.f32.mrf.mxu0
      %440 = vmatprep.mubr.f32.mxu0 0.0
      %441 = vmatmul.mubr.f32.gmra.mxu0 %v277
      %v442 = vpop.f32.mrf.mxu0
      %v443 = vadd.f32 %v267, %v442
      %v444 = vpop.f32.mrf.mxu0
      %445 = vmatprep.mubr.f32.mxu0 0.0
      %446 = vmatmul.mubr.f32.gmra.mxu0 %v280
      %v447 = vpop.f32.mrf.mxu0
      %v448 = vadd.f32 %v267, %v447
      %v449 = vpop.f32.mrf.mxu0
      %450 = vmatprep.mubr.f32.mxu0 0.0
      %451 = vmatmul.mubr.f32.gmra.mxu0 %v283
      %v452 = vpop.f32.mrf.mxu0
      %v453 = vadd.f32 %v267, %v452
      %v454 = vpop.f32.mrf.mxu0
      %455 = vmatprep.mubr.f32.mxu0 0.0
      %456 = vmatmul.mubr.f32.gmra.mxu0 %v286
      %v457 = vpop.f32.mrf.mxu0
      %v458 = vadd.f32 %v267, %v457
      %v459 = vpop.f32.mrf.mxu0
      %460 = vmatprep.mubr.f32.mxu0 0.0
      %461 = vmatmul.mubr.f32.gmra.mxu0 %v289
      %v462 = vpop.f32.mrf.mxu0
      %v463 = vadd.f32 %v267, %v462
      %v464 = vpop.f32.mrf.mxu0
      %465 = vmatprep.mubr.f32.mxu0 0.0
      %466 = vmatmul.mubr.f32.gmra.mxu0 %v292
      %v467 = vpop.f32.mrf.mxu0
      %v468 = vadd.f32 %v267, %v467
      %v469 = vpop.f32.mrf.mxu0
      %470 = vmatprep.mubr.f32.mxu0 0.0
      %471 = vmatmul.mubr.f32.gmra.mxu0 %v295
      %v472 = vpop.f32.mrf.mxu0
      %v473 = vadd.f32 %v267, %v472
      %v474 = vpop.f32.mrf.mxu0
      %475 = vmatprep.mubr.f32.mxu0 0.0
      %476 = vmatmul.mubr.f32.gmra.mxu0 %v298
      %v477 = vpop.f32.mrf.mxu0
      %v478 = vadd.f32 %v267, %v477
      %v479 = vpop.f32.mrf.mxu0
      %480 = vmatprep.mubr.f32.mxu0 0.0
      %481 = vmatmul.mubr.f32.gmra.mxu0 %v301
      %v482 = vpop.f32.mrf.mxu0
      %v483 = vadd.f32 %v267, %v482
      %v484 = vpop.f32.mrf.mxu0
      %485 = vmatprep.mubr.f32.mxu0 0.0
      %486 = vmatmul.mubr.f32.gmra.mxu0 %v304
      %v487 = vpop.f32.mrf.mxu0
      %v488 = vadd.f32 %v267, %v487
      %v489 = vpop.f32.mrf.mxu0
      %490 = vmatprep.mubr.f32.mxu0 0.0
      %491 = vmatmul.mubr.f32.gmra.mxu0 %v307
      %v492 = vpop.f32.mrf.mxu0
      %v493 = vadd.f32 %v267, %v492
      %v494 = vpop.f32.mrf.mxu0
      %495 = vmatprep.mubr.f32.mxu0 0.0
      %496 = vmatmul.mubr.f32.gmra.mxu0 %v310
      %v497 = vpop.f32.mrf.mxu0
      %v498 = vadd.f32 %v267, %v497
      %v499 = vpop.f32.mrf.mxu0
      %500 = vmatprep.mubr.f32.mxu0 0.0
      %501 = vmatmul.mubr.f32.gmra.mxu0 %v313
      %v502 = vpop.f32.mrf.mxu0
      %v503 = vadd.f32 %v267, %v502
      %v504 = vpop.f32.mrf.mxu0
      %505 = vmatprep.mubr.f32.mxu0 0.0
      %506 = vmatmul.mubr.f32.gmra.mxu0 %v316
      %v507 = vpop.f32.mrf.mxu0
      %v508 = vadd.f32 %v267, %v507
      %v509 = vpop.f32.mrf.mxu0
      %510 = vmatprep.mubr.f32.mxu0 0.0
      %511 = vmatmul.mubr.f32.gmra.mxu0 %v319
      %v512 = vpop.f32.mrf.mxu0
      %v513 = vadd.f32 %v267, %v512
      %v514 = vpop.f32.mrf.mxu0
      %515 = vmatprep.mubr.f32.mxu0 0.0
      %516 = vmatmul.mubr.f32.gmra.mxu0 %v322
      %v517 = vpop.f32.mrf.mxu0
      %v518 = vadd.f32 %v267, %v517
      %v519 = vpop.f32.mrf.mxu0
      %520 = vmatprep.mubr.f32.mxu0 0.0
      %521 = vmatmul.mubr.f32.gmra.mxu0 %v325
      %v522 = vpop.f32.mrf.mxu0
      %v523 = vadd.f32 %v267, %v522
      %v524 = vpop.f32.mrf.mxu0
      %525 = vmatprep.mubr.f32.mxu0 0.0
      %526 = vmatmul.mubr.f32.gmra.mxu0 %v328
      %v527 = vpop.f32.mrf.mxu0
      %v528 = vadd.f32 %v267, %v527
      %v529 = vpop.f32.mrf.mxu0
      %530 = vmatprep.mubr.f32.mxu0 0.0
      %531 = vmatmul.mubr.f32.gmra.mxu0 %v331
      %v532 = vpop.f32.mrf.mxu0
      %v533 = vadd.f32 %v267, %v532
      %v534 = vpop.f32.mrf.mxu0
      %535 = vmatprep.mubr.f32.mxu0 0.0
      %536 = vmatmul.mubr.f32.gmra.mxu0 %v334
      %v537 = vpop.f32.mrf.mxu0
      %v538 = vadd.f32 %v267, %v537
      %v539 = vpop.f32.mrf.mxu0
      %540 = vmatprep.mubr.f32.mxu0 0.0
      %541 = vmatmul.mubr.f32.gmra.mxu0 %v337
      %v542 = vpop.f32.mrf.mxu0
      %v543 = vadd.f32 %v267, %v542
      %v544 = vpop.f32.mrf.mxu0
      %545 = vmatprep.mubr.f32.mxu0 0.0
      %546 = vmatmul.mubr.f32.gmra.mxu0 %v340
      %v547 = vpop.f32.mrf.mxu0
      %v548 = vadd.f32 %v267, %v547
      %v549 = vpop.f32.mrf.mxu0
      %550 = vmatprep.mubr.f32.mxu0 0.0
      %551 = vmatmul.mubr.f32.gmra.mxu0 %v343
      %v552 = vpop.f32.mrf.mxu0
      %v553 = vadd.f32 %v267, %v552
      %v554 = vpop.f32.mrf.mxu0
      %555 = vmatprep.mubr.f32.mxu0 0.0
      %556 = vmatmul.mubr.f32.gmra.mxu0 %v346
      %v557 = vpop.f32.mrf.mxu0
      %v558 = vadd.f32 %v267, %v557
      %v559 = vpop.f32.mrf.mxu0
      %560 = vmatprep.mubr.f32.mxu0 0.0
      %561 = vmatmul.mubr.f32.gmra.mxu0 %v349
      %v562 = vpop.f32.mrf.mxu0
      %v563 = vadd.f32 %v267, %v562
      %v564 = vpop.f32.mrf.mxu0
      %565 = vmatprep.mubr.f32.mxu0 0.0
      %566 = vmatmul.mubr.f32.gmra.mxu0 %v352
      %v567 = vpop.f32.mrf.mxu0
      %v568 = vadd.f32 %v267, %v567
      %v569 = vpop.f32.mrf.mxu0
      %570 = vmatprep.mubr.f32.mxu0 0.0
      %571 = vmatmul.mubr.f32.gmra.mxu0 %v355
      %v572 = vpop.f32.mrf.mxu0
      %v573 = vadd.f32 %v267, %v572
      %v574 = vpop.f32.mrf.mxu0
      %575 = vmatprep.mubr.f32.mxu0 0.0
      %576 = vmatmul.mubr.f32.gmra.mxu0 %v358
      %v577 = vpop.f32.mrf.mxu0
      %v578 = vadd.f32 %v267, %v577
      %v579 = vpop.f32.mrf.mxu0
      %580 = vmatprep.mubr.f32.mxu0 0.0
      %581 = vmatmul.mubr.f32.gmra.mxu0 %v361
      %v582 = vpop.f32.mrf.mxu0
      %v583 = vadd.f32 %v267, %v582
      %v584 = vpop.f32.mrf.mxu0
      %585 = vmatprep.mubr.f32.mxu0 0.0
      %586 = vmatmul.mubr.f32.gmra.mxu0 %v364
      %v587 = vpop.f32.mrf.mxu0
      %v588 = vadd.f32 %v267, %v587
      %v589 = vpop.f32.mrf.mxu0
      %590 = vdwg.mxu0
      %v591 = vmul.f32 %v433, 0.5
      %v592 = vmul.f32 %v438, 0.5
      %v593 = vmul.f32 %v443, 0.5
      %v594 = vmul.f32 %v448, 0.5
      %v595 = vmul.f32 %v453, 0.5
      %v596 = vmul.f32 %v458, 0.5
      %v597 = vmul.f32 %v463, 0.5
      %v598 = vmul.f32 %v468, 0.5
      %v599 = vmul.f32 %v473, 0.5
      %v600 = vmul.f32 %v478, 0.5
      %v601 = vmul.f32 %v483, 0.5
      %v602 = vmul.f32 %v488, 0.5
      %v603 = vmul.f32 %v493, 0.5
      %v604 = vmul.f32 %v498, 0.5
      %v605 = vmul.f32 %v503, 0.5
      %v606 = vmul.f32 %v508, 0.5
      %v607 = vmul.f32 %v513, 0.5
      %v608 = vmul.f32 %v518, 0.5
      %v609 = vmul.f32 %v523, 0.5
      %v610 = vmul.f32 %v528, 0.5
      %v611 = vmul.f32 %v533, 0.5
      %v612 = vmul.f32 %v538, 0.5
      %v613 = vmul.f32 %v543, 0.5
      %v614 = vmul.f32 %v548, 0.5
      %v615 = vmul.f32 %v553, 0.5
      %v616 = vmul.f32 %v558, 0.5
      %v617 = vmul.f32 %v563, 0.5
      %v618 = vmul.f32 %v568, 0.5
      %v619 = vmul.f32 %v573, 0.5
      %v620 = vmul.f32 %v578, 0.5
      %v621 = vmul.f32 %v583, 0.5
      %v622 = vmul.f32 %v588, 0.5
      %v623 = vmul.f32 %v433, 0.70710677
      %v624 = vmul.f32 %v438, 0.70710677
      %v625 = vmul.f32 %v443, 0.70710677
      %v626 = vmul.f32 %v448, 0.70710677
      %v627 = vmul.f32 %v453, 0.70710677
      %v628 = vmul.f32 %v458, 0.70710677
      %v629 = vmul.f32 %v463, 0.70710677
      %v630 = vmul.f32 %v468, 0.70710677
      %v631 = vmul.f32 %v473, 0.70710677
      %v632 = vmul.f32 %v478, 0.70710677
      %v633 = vmul.f32 %v483, 0.70710677
      %v634 = vmul.f32 %v488, 0.70710677
      %v635 = vmul.f32 %v493, 0.70710677
      %v636 = vmul.f32 %v498, 0.70710677
      %v637 = vmul.f32 %v503, 0.70710677
      %v638 = vmul.f32 %v508, 0.70710677
      %v639 = vmul.f32 %v513, 0.70710677
      %v640 = vmul.f32 %v518, 0.70710677
      %v641 = vmul.f32 %v523, 0.70710677
      %v642 = vmul.f32 %v528, 0.70710677
      %v643 = vmul.f32 %v533, 0.70710677
      %v644 = vmul.f32 %v538, 0.70710677
      %v645 = vmul.f32 %v543, 0.70710677
      %v646 = vmul.f32 %v548, 0.70710677
      %v647 = vmul.f32 %v553, 0.70710677
      %v648 = vmul.f32 %v558, 0.70710677
      %v649 = vmul.f32 %v563, 0.70710677
      %v650 = vmul.f32 %v568, 0.70710677
      %v651 = vmul.f32 %v573, 0.70710677
      %v652 = vmul.f32 %v578, 0.70710677
      %v653 = vmul.f32 %v583, 0.70710677
      %v654 = vmul.f32 %v588, 0.70710677
      %v655 = vand.u32 2147483647, %v623
      %v656 = vand.u32 2147483647, %v624
      %v657 = vand.u32 2147483647, %v625
      %v658 = vand.u32 2147483647, %v626
      %v659 = vand.u32 2147483647, %v627
      %v660 = vand.u32 2147483647, %v628
      %v661 = vand.u32 2147483647, %v629
      %v662 = vand.u32 2147483647, %v630
      %v663 = vand.u32 2147483647, %v631
      %v664 = vand.u32 2147483647, %v632
      %v665 = vand.u32 2147483647, %v633
      %v666 = vand.u32 2147483647, %v634
      %v667 = vand.u32 2147483647, %v635
      %v668 = vand.u32 2147483647, %v636
      %v669 = vand.u32 2147483647, %v637
      %v670 = vand.u32 2147483647, %v638
      %v671 = vand.u32 2147483647, %v639
      %v672 = vand.u32 2147483647, %v640
      %v673 = vand.u32 2147483647, %v641
      %v674 = vand.u32 2147483647, %v642
      %v675 = vand.u32 2147483647, %v643
      %v676 = vand.u32 2147483647, %v644
      %v677 = vand.u32 2147483647, %v645
      %v678 = vand.u32 2147483647, %v646
      %v679 = vand.u32 2147483647, %v647
      %v680 = vand.u32 2147483647, %v648
      %v681 = vand.u32 2147483647, %v649
      %v682 = vand.u32 2147483647, %v650
      %v683 = vand.u32 2147483647, %v651
      %v684 = vand.u32 2147483647, %v652
      %v685 = vand.u32 2147483647, %v653
      %v686 = vand.u32 2147483647, %v654
      %v687 = vmul.f32 %v655, 0.3275911
      %v688 = vmul.f32 %v656, 0.3275911
      %v689 = vmul.f32 %v657, 0.3275911
      %v690 = vmul.f32 %v658, 0.3275911
      %v691 = vmul.f32 %v659, 0.3275911
      %v692 = vmul.f32 %v660, 0.3275911
      %v693 = vmul.f32 %v661, 0.3275911
      %v694 = vmul.f32 %v662, 0.3275911
      %v695 = vmul.f32 %v663, 0.3275911
      %v696 = vmul.f32 %v664, 0.3275911
      %v697 = vmul.f32 %v665, 0.3275911
      %v698 = vmul.f32 %v666, 0.3275911
      %v699 = vmul.f32 %v667, 0.3275911
      %v700 = vmul.f32 %v668, 0.3275911
      %v701 = vmul.f32 %v669, 0.3275911
      %v702 = vmul.f32 %v670, 0.3275911
      %v703 = vmul.f32 %v671, 0.3275911
      %v704 = vmul.f32 %v672, 0.3275911
      %v705 = vmul.f32 %v673, 0.3275911
      %v706 = vmul.f32 %v674, 0.3275911
      %v707 = vmul.f32 %v675, 0.3275911
      %v708 = vmul.f32 %v676, 0.3275911
      %v709 = vmul.f32 %v677, 0.3275911
      %v710 = vmul.f32 %v678, 0.3275911
      %v711 = vmul.f32 %v679, 0.3275911
      %v712 = vmul.f32 %v680, 0.3275911
      %v713 = vmul.f32 %v681, 0.3275911
      %v714 = vmul.f32 %v682, 0.3275911
      %v715 = vmul.f32 %v683, 0.3275911
      %v716 = vmul.f32 %v684, 0.3275911
      %v717 = vmul.f32 %v685, 0.3275911
      %v718 = vmul.f32 %v686, 0.3275911
      %v719 = vadd.f32 %v687, 1.0
      %v720 = vadd.f32 %v688, 1.0
      %v721 = vadd.f32 %v689, 1.0
      %v722 = vadd.f32 %v690, 1.0
      %v723 = vadd.f32 %v691, 1.0
      %v724 = vadd.f32 %v692, 1.0
      %v725 = vadd.f32 %v693, 1.0
      %v726 = vadd.f32 %v694, 1.0
      %v727 = vadd.f32 %v695, 1.0
      %v728 = vadd.f32 %v696, 1.0
      %v729 = vadd.f32 %v697, 1.0
      %v730 = vadd.f32 %v698, 1.0
      %v731 = vadd.f32 %v699, 1.0
      %v732 = vadd.f32 %v700, 1.0
      %v733 = vadd.f32 %v701, 1.0
      %v734 = vadd.f32 %v702, 1.0
      %v735 = vadd.f32 %v703, 1.0
      %v736 = vadd.f32 %v704, 1.0
      %v737 = vadd.f32 %v705, 1.0
      %v738 = vadd.f32 %v706, 1.0
      %v739 = vadd.f32 %v707, 1.0
      %v740 = vadd.f32 %v708, 1.0
      %v741 = vadd.f32 %v709, 1.0
      %v742 = vadd.f32 %v710, 1.0
      %v743 = vadd.f32 %v711, 1.0
      %v744 = vadd.f32 %v712, 1.0
      %v745 = vadd.f32 %v713, 1.0
      %v746 = vadd.f32 %v714, 1.0
      %v747 = vadd.f32 %v715, 1.0
      %v748 = vadd.f32 %v716, 1.0
      %v749 = vadd.f32 %v717, 1.0
      %v750 = vadd.f32 %v718, 1.0
      %v751 = vrcp.pop %v719
      %v752 = vmul.f32 1.0, %v751
      %v753 = vrcp.pop %v720
      %v754 = vmul.f32 1.0, %v753
      %v755 = vrcp.pop %v721
      %v756 = vmul.f32 1.0, %v755
      %v757 = vrcp.pop %v722
      %v758 = vmul.f32 1.0, %v757
      %v759 = vrcp.pop %v723
      %v760 = vmul.f32 1.0, %v759
      %v761 = vrcp.pop %v724
      %v762 = vmul.f32 1.0, %v761
      %v763 = vrcp.pop %v725
      %v764 = vmul.f32 1.0, %v763
      %v765 = vrcp.pop %v726
      %v766 = vmul.f32 1.0, %v765
      %v767 = vrcp.pop %v727
      %v768 = vmul.f32 1.0, %v767
      %v769 = vrcp.pop %v728
      %v770 = vmul.f32 1.0, %v769
      %v771 = vrcp.pop %v729
      %v772 = vmul.f32 1.0, %v771
      %v773 = vrcp.pop %v730
      %v774 = vmul.f32 1.0, %v773
      %v775 = vrcp.pop %v731
      %v776 = vmul.f32 1.0, %v775
      %v777 = vrcp.pop %v732
      %v778 = vmul.f32 1.0, %v777
      %v779 = vrcp.pop %v733
      %v780 = vmul.f32 1.0, %v779
      %v781 = vrcp.pop %v734
      %v782 = vmul.f32 1.0, %v781
      %v783 = vrcp.pop %v735
      %v784 = vmul.f32 1.0, %v783
      %v785 = vrcp.pop %v736
      %v786 = vmul.f32 1.0, %v785
      %v787 = vrcp.pop %v737
      %v788 = vmul.f32 1.0, %v787
      %v789 = vrcp.pop %v738
      %v790 = vmul.f32 1.0, %v789
      %v791 = vrcp.pop %v739
      %v792 = vmul.f32 1.0, %v791
      %v793 = vrcp.pop %v740
      %v794 = vmul.f32 1.0, %v793
      %v795 = vrcp.pop %v741
      %v796 = vmul.f32 1.0, %v795
      %v797 = vrcp.pop %v742
      %v798 = vmul.f32 1.0, %v797
      %v799 = vrcp.pop %v743
      %v800 = vmul.f32 1.0, %v799
      %v801 = vrcp.pop %v744
      %v802 = vmul.f32 1.0, %v801
      %v803 = vrcp.pop %v745
      %v804 = vmul.f32 1.0, %v803
      %v805 = vrcp.pop %v746
      %v806 = vmul.f32 1.0, %v805
      %v807 = vrcp.pop %v747
      %v808 = vmul.f32 1.0, %v807
      %v809 = vrcp.pop %v748
      %v810 = vmul.f32 1.0, %v809
      %v811 = vrcp.pop %v749
      %v812 = vmul.f32 1.0, %v811
      %v813 = vrcp.pop %v750
      %v814 = vmul.f32 1.0, %v813
      %v815 = vmul.f32 %v752, 1.0614054
      %v816 = vmul.f32 %v754, 1.0614054
      %v817 = vmul.f32 %v756, 1.0614054
      %v818 = vmul.f32 %v758, 1.0614054
      %v819 = vmul.f32 %v760, 1.0614054
      %v820 = vmul.f32 %v762, 1.0614054
      %v821 = vmul.f32 %v764, 1.0614054
      %v822 = vmul.f32 %v766, 1.0614054
      %v823 = vmul.f32 %v768, 1.0614054
      %v824 = vmul.f32 %v770, 1.0614054
      %v825 = vmul.f32 %v772, 1.0614054
      %v826 = vmul.f32 %v774, 1.0614054
      %v827 = vmul.f32 %v776, 1.0614054
      %v828 = vmul.f32 %v778, 1.0614054
      %v829 = vmul.f32 %v780, 1.0614054
      %v830 = vmul.f32 %v782, 1.0614054
      %v831 = vmul.f32 %v784, 1.0614054
      %v832 = vmul.f32 %v786, 1.0614054
      %v833 = vmul.f32 %v788, 1.0614054
      %v834 = vmul.f32 %v790, 1.0614054
      %v835 = vmul.f32 %v792, 1.0614054
      %v836 = vmul.f32 %v794, 1.0614054
      %v837 = vmul.f32 %v796, 1.0614054
      %v838 = vmul.f32 %v798, 1.0614054
      %v839 = vmul.f32 %v800, 1.0614054
      %v840 = vmul.f32 %v802, 1.0614054
      %v841 = vmul.f32 %v804, 1.0614054
      %v842 = vmul.f32 %v806, 1.0614054
      %v843 = vmul.f32 %v808, 1.0614054
      %v844 = vmul.f32 %v810, 1.0614054
      %v845 = vmul.f32 %v812, 1.0614054
      %v846 = vmul.f32 %v814, 1.0614054
      %v847 = vadd.f32 %v815, -1.4531521
      %v848 = vadd.f32 %v816, -1.4531521
      %v849 = vadd.f32 %v817, -1.4531521
      %v850 = vadd.f32 %v818, -1.4531521
      %v851 = vadd.f32 %v819, -1.4531521
      %v852 = vadd.f32 %v820, -1.4531521
      %v853 = vadd.f32 %v821, -1.4531521
      %v854 = vadd.f32 %v822, -1.4531521
      %v855 = vadd.f32 %v823, -1.4531521
      %v856 = vadd.f32 %v824, -1.4531521
      %v857 = vadd.f32 %v825, -1.4531521
      %v858 = vadd.f32 %v826, -1.4531521
      %v859 = vadd.f32 %v827, -1.4531521
      %v860 = vadd.f32 %v828, -1.4531521
      %v861 = vadd.f32 %v829, -1.4531521
      %v862 = vadd.f32 %v830, -1.4531521
      %v863 = vadd.f32 %v831, -1.4531521
      %v864 = vadd.f32 %v832, -1.4531521
      %v865 = vadd.f32 %v833, -1.4531521
      %v866 = vadd.f32 %v834, -1.4531521
      %v867 = vadd.f32 %v835, -1.4531521
      %v868 = vadd.f32 %v836, -1.4531521
      %v869 = vadd.f32 %v837, -1.4531521
      %v870 = vadd.f32 %v838, -1.4531521
      %v871 = vadd.f32 %v839, -1.4531521
      %v872 = vadd.f32 %v840, -1.4531521
      %v873 = vadd.f32 %v841, -1.4531521
      %v874 = vadd.f32 %v842, -1.4531521
      %v875 = vadd.f32 %v843, -1.4531521
      %v876 = vadd.f32 %v844, -1.4531521
      %v877 = vadd.f32 %v845, -1.4531521
      %v878 = vadd.f32 %v846, -1.4531521
      %v879 = vmul.f32 %v847, %v752
      %v880 = vmul.f32 %v848, %v754
      %v881 = vmul.f32 %v849, %v756
      %v882 = vmul.f32 %v850, %v758
      %v883 = vmul.f32 %v851, %v760
      %v884 = vmul.f32 %v852, %v762
      %v885 = vmul.f32 %v853, %v764
      %v886 = vmul.f32 %v854, %v766
      %v887 = vmul.f32 %v855, %v768
      %v888 = vmul.f32 %v856, %v770
      %v889 = vmul.f32 %v857, %v772
      %v890 = vmul.f32 %v858, %v774
      %v891 = vmul.f32 %v859, %v776
      %v892 = vmul.f32 %v860, %v778
      %v893 = vmul.f32 %v861, %v780
      %v894 = vmul.f32 %v862, %v782
      %v895 = vmul.f32 %v863, %v784
      %v896 = vmul.f32 %v864, %v786
      %v897 = vmul.f32 %v865, %v788
      %v898 = vmul.f32 %v866, %v790
      %v899 = vmul.f32 %v867, %v792
      %v900 = vmul.f32 %v868, %v794
      %v901 = vmul.f32 %v869, %v796
      %v902 = vmul.f32 %v870, %v798
      %v903 = vmul.f32 %v871, %v800
      %v904 = vmul.f32 %v872, %v802
      %v905 = vmul.f32 %v873, %v804
      %v906 = vmul.f32 %v874, %v806
      %v907 = vmul.f32 %v875, %v808
      %v908 = vmul.f32 %v876, %v810
      %v909 = vmul.f32 %v877, %v812
      %v910 = vmul.f32 %v878, %v814
      %v911 = vadd.f32 %v879, 1.4214138
      %v912 = vadd.f32 %v880, 1.4214138
      %v913 = vadd.f32 %v881, 1.4214138
      %v914 = vadd.f32 %v882, 1.4214138
      %v915 = vadd.f32 %v883, 1.4214138
      %v916 = vadd.f32 %v884, 1.4214138
      %v917 = vadd.f32 %v885, 1.4214138
      %v918 = vadd.f32 %v886, 1.4214138
      %v919 = vadd.f32 %v887, 1.4214138
      %v920 = vadd.f32 %v888, 1.4214138
      %v921 = vadd.f32 %v889, 1.4214138
      %v922 = vadd.f32 %v890, 1.4214138
      %v923 = vadd.f32 %v891, 1.4214138
      %v924 = vadd.f32 %v892, 1.4214138
      %v925 = vadd.f32 %v893, 1.4214138
      %v926 = vadd.f32 %v894, 1.4214138
      %v927 = vadd.f32 %v895, 1.4214138
      %v928 = vadd.f32 %v896, 1.4214138
      %v929 = vadd.f32 %v897, 1.4214138
      %v930 = vadd.f32 %v898, 1.4214138
      %v931 = vadd.f32 %v899, 1.4214138
      %v932 = vadd.f32 %v900, 1.4214138
      %v933 = vadd.f32 %v901, 1.4214138
      %v934 = vadd.f32 %v902, 1.4214138
      %v935 = vadd.f32 %v903, 1.4214138
      %v936 = vadd.f32 %v904, 1.4214138
      %v937 = vadd.f32 %v905, 1.4214138
      %v938 = vadd.f32 %v906, 1.4214138
      %v939 = vadd.f32 %v907, 1.4214138
      %v940 = vadd.f32 %v908, 1.4214138
      %v941 = vadd.f32 %v909, 1.4214138
      %v942 = vadd.f32 %v910, 1.4214138
      %v943 = vmul.f32 %v911, %v752
      %v944 = vmul.f32 %v912, %v754
      %v945 = vmul.f32 %v913, %v756
      %v946 = vmul.f32 %v914, %v758
      %v947 = vmul.f32 %v915, %v760
      %v948 = vmul.f32 %v916, %v762
      %v949 = vmul.f32 %v917, %v764
      %v950 = vmul.f32 %v918, %v766
      %v951 = vmul.f32 %v919, %v768
      %v952 = vmul.f32 %v920, %v770
      %v953 = vmul.f32 %v921, %v772
      %v954 = vmul.f32 %v922, %v774
      %v955 = vmul.f32 %v923, %v776
      %v956 = vmul.f32 %v924, %v778
      %v957 = vmul.f32 %v925, %v780
      %v958 = vmul.f32 %v926, %v782
      %v959 = vmul.f32 %v927, %v784
      %v960 = vmul.f32 %v928, %v786
      %v961 = vmul.f32 %v929, %v788
      %v962 = vmul.f32 %v930, %v790
      %v963 = vmul.f32 %v931, %v792
      %v964 = vmul.f32 %v932, %v794
      %v965 = vmul.f32 %v933, %v796
      %v966 = vmul.f32 %v934, %v798
      %v967 = vmul.f32 %v935, %v800
      %v968 = vmul.f32 %v936, %v802
      %v969 = vmul.f32 %v937, %v804
      %v970 = vmul.f32 %v938, %v806
      %v971 = vmul.f32 %v939, %v808
      %v972 = vmul.f32 %v940, %v810
      %v973 = vmul.f32 %v941, %v812
      %v974 = vmul.f32 %v942, %v814
      %v975 = vadd.f32 %v943, -0.28449672
      %v976 = vadd.f32 %v944, -0.28449672
      %v977 = vadd.f32 %v945, -0.28449672
      %v978 = vadd.f32 %v946, -0.28449672
      %v979 = vadd.f32 %v947, -0.28449672
      %v980 = vadd.f32 %v948, -0.28449672
      %v981 = vadd.f32 %v949, -0.28449672
      %v982 = vadd.f32 %v950, -0.28449672
      %v983 = vadd.f32 %v951, -0.28449672
      %v984 = vadd.f32 %v952, -0.28449672
      %v985 = vadd.f32 %v953, -0.28449672
      %v986 = vadd.f32 %v954, -0.28449672
      %v987 = vadd.f32 %v955, -0.28449672
      %v988 = vadd.f32 %v956, -0.28449672
      %v989 = vadd.f32 %v957, -0.28449672
      %v990 = vadd.f32 %v958, -0.28449672
      %v991 = vadd.f32 %v959, -0.28449672
      %v992 = vadd.f32 %v960, -0.28449672
      %v993 = vadd.f32 %v961, -0.28449672
      %v994 = vadd.f32 %v962, -0.28449672
      %v995 = vadd.f32 %v963, -0.28449672
      %v996 = vadd.f32 %v964, -0.28449672
      %v997 = vadd.f32 %v965, -0.28449672
      %v998 = vadd.f32 %v966, -0.28449672
      %v999 = vadd.f32 %v967, -0.28449672
      %v1000 = vadd.f32 %v968, -0.28449672
      %v1001 = vadd.f32 %v969, -0.28449672
      %v1002 = vadd.f32 %v970, -0.28449672
      %v1003 = vadd.f32 %v971, -0.28449672
      %v1004 = vadd.f32 %v972, -0.28449672
      %v1005 = vadd.f32 %v973, -0.28449672
      %v1006 = vadd.f32 %v974, -0.28449672
      %v1007 = vmul.f32 %v975, %v752
      %v1008 = vmul.f32 %v976, %v754
      %v1009 = vmul.f32 %v977, %v756
      %v1010 = vmul.f32 %v978, %v758
      %v1011 = vmul.f32 %v979, %v760
      %v1012 = vmul.f32 %v980, %v762
      %v1013 = vmul.f32 %v981, %v764
      %v1014 = vmul.f32 %v982, %v766
      %v1015 = vmul.f32 %v983, %v768
      %v1016 = vmul.f32 %v984, %v770
      %v1017 = vmul.f32 %v985, %v772
      %v1018 = vmul.f32 %v986, %v774
      %v1019 = vmul.f32 %v987, %v776
      %v1020 = vmul.f32 %v988, %v778
      %v1021 = vmul.f32 %v989, %v780
      %v1022 = vmul.f32 %v990, %v782
      %v1023 = vmul.f32 %v991, %v784
      %v1024 = vmul.f32 %v992, %v786
      %v1025 = vmul.f32 %v993, %v788
      %v1026 = vmul.f32 %v994, %v790
      %v1027 = vmul.f32 %v995, %v792
      %v1028 = vmul.f32 %v996, %v794
      %v1029 = vmul.f32 %v997, %v796
      %v1030 = vmul.f32 %v998, %v798
      %v1031 = vmul.f32 %v999, %v800
      %v1032 = vmul.f32 %v1000, %v802
      %v1033 = vmul.f32 %v1001, %v804
      %v1034 = vmul.f32 %v1002, %v806
      %v1035 = vmul.f32 %v1003, %v808
      %v1036 = vmul.f32 %v1004, %v810
      %v1037 = vmul.f32 %v1005, %v812
      %v1038 = vmul.f32 %v1006, %v814
      %v1039 = vadd.f32 %v1007, 0.2548296
      %v1040 = vadd.f32 %v1008, 0.2548296
      %v1041 = vadd.f32 %v1009, 0.2548296
      %v1042 = vadd.f32 %v1010, 0.2548296
      %v1043 = vadd.f32 %v1011, 0.2548296
      %v1044 = vadd.f32 %v1012, 0.2548296
      %v1045 = vadd.f32 %v1013, 0.2548296
      %v1046 = vadd.f32 %v1014, 0.2548296
      %v1047 = vadd.f32 %v1015, 0.2548296
      %v1048 = vadd.f32 %v1016, 0.2548296
      %v1049 = vadd.f32 %v1017, 0.2548296
      %v1050 = vadd.f32 %v1018, 0.2548296
      %v1051 = vadd.f32 %v1019, 0.2548296
      %v1052 = vadd.f32 %v1020, 0.2548296
      %v1053 = vadd.f32 %v1021, 0.2548296
      %v1054 = vadd.f32 %v1022, 0.2548296
      %v1055 = vadd.f32 %v1023, 0.2548296
      %v1056 = vadd.f32 %v1024, 0.2548296
      %v1057 = vadd.f32 %v1025, 0.2548296
      %v1058 = vadd.f32 %v1026, 0.2548296
      %v1059 = vadd.f32 %v1027, 0.2548296
      %v1060 = vadd.f32 %v1028, 0.2548296
      %v1061 = vadd.f32 %v1029, 0.2548296
      %v1062 = vadd.f32 %v1030, 0.2548296
      %v1063 = vadd.f32 %v1031, 0.2548296
      %v1064 = vadd.f32 %v1032, 0.2548296
      %v1065 = vadd.f32 %v1033, 0.2548296
      %v1066 = vadd.f32 %v1034, 0.2548296
      %v1067 = vadd.f32 %v1035, 0.2548296
      %v1068 = vadd.f32 %v1036, 0.2548296
      %v1069 = vadd.f32 %v1037, 0.2548296
      %v1070 = vadd.f32 %v1038, 0.2548296
      %v1071 = vmul.f32 %v1039, %v752
      %v1072 = vmul.f32 %v1040, %v754
      %v1073 = vmul.f32 %v1041, %v756
      %v1074 = vmul.f32 %v1042, %v758
      %v1075 = vmul.f32 %v1043, %v760
      %v1076 = vmul.f32 %v1044, %v762
      %v1077 = vmul.f32 %v1045, %v764
      %v1078 = vmul.f32 %v1046, %v766
      %v1079 = vmul.f32 %v1047, %v768
      %v1080 = vmul.f32 %v1048, %v770
      %v1081 = vmul.f32 %v1049, %v772
      %v1082 = vmul.f32 %v1050, %v774
      %v1083 = vmul.f32 %v1051, %v776
      %v1084 = vmul.f32 %v1052, %v778
      %v1085 = vmul.f32 %v1053, %v780
      %v1086 = vmul.f32 %v1054, %v782
      %v1087 = vmul.f32 %v1055, %v784
      %v1088 = vmul.f32 %v1056, %v786
      %v1089 = vmul.f32 %v1057, %v788
      %v1090 = vmul.f32 %v1058, %v790
      %v1091 = vmul.f32 %v1059, %v792
      %v1092 = vmul.f32 %v1060, %v794
      %v1093 = vmul.f32 %v1061, %v796
      %v1094 = vmul.f32 %v1062, %v798
      %v1095 = vmul.f32 %v1063, %v800
      %v1096 = vmul.f32 %v1064, %v802
      %v1097 = vmul.f32 %v1065, %v804
      %v1098 = vmul.f32 %v1066, %v806
      %v1099 = vmul.f32 %v1067, %v808
      %v1100 = vmul.f32 %v1068, %v810
      %v1101 = vmul.f32 %v1069, %v812
      %v1102 = vmul.f32 %v1070, %v814
      %v1103 = vsub.f32 0.0, %v655
      %v1104 = vsub.f32 0.0, %v656
      %v1105 = vsub.f32 0.0, %v657
      %v1106 = vsub.f32 0.0, %v658
      %v1107 = vsub.f32 0.0, %v659
      %v1108 = vsub.f32 0.0, %v660
      %v1109 = vsub.f32 0.0, %v661
      %v1110 = vsub.f32 0.0, %v662
      %v1111 = vsub.f32 0.0, %v663
      %v1112 = vsub.f32 0.0, %v664
      %v1113 = vsub.f32 0.0, %v665
      %v1114 = vsub.f32 0.0, %v666
      %v1115 = vsub.f32 0.0, %v667
      %v1116 = vsub.f32 0.0, %v668
      %v1117 = vsub.f32 0.0, %v669
      %v1118 = vsub.f32 0.0, %v670
      %v1119 = vsub.f32 0.0, %v671
      %v1120 = vsub.f32 0.0, %v672
      %v1121 = vsub.f32 0.0, %v673
      %v1122 = vsub.f32 0.0, %v674
      %v1123 = vsub.f32 0.0, %v675
      %v1124 = vsub.f32 0.0, %v676
      %v1125 = vsub.f32 0.0, %v677
      %v1126 = vsub.f32 0.0, %v678
      %v1127 = vsub.f32 0.0, %v679
      %v1128 = vsub.f32 0.0, %v680
      %v1129 = vsub.f32 0.0, %v681
      %v1130 = vsub.f32 0.0, %v682
      %v1131 = vsub.f32 0.0, %v683
      %v1132 = vsub.f32 0.0, %v684
      %v1133 = vsub.f32 0.0, %v685
      %v1134 = vsub.f32 0.0, %v686
      %v1135 = vmul.f32 %v1103, %v655
      %v1136 = vmul.f32 %v1104, %v656
      %v1137 = vmul.f32 %v1105, %v657
      %v1138 = vmul.f32 %v1106, %v658
      %v1139 = vmul.f32 %v1107, %v659
      %v1140 = vmul.f32 %v1108, %v660
      %v1141 = vmul.f32 %v1109, %v661
      %v1142 = vmul.f32 %v1110, %v662
      %v1143 = vmul.f32 %v1111, %v663
      %v1144 = vmul.f32 %v1112, %v664
      %v1145 = vmul.f32 %v1113, %v665
      %v1146 = vmul.f32 %v1114, %v666
      %v1147 = vmul.f32 %v1115, %v667
      %v1148 = vmul.f32 %v1116, %v668
      %v1149 = vmul.f32 %v1117, %v669
      %v1150 = vmul.f32 %v1118, %v670
      %v1151 = vmul.f32 %v1119, %v671
      %v1152 = vmul.f32 %v1120, %v672
      %v1153 = vmul.f32 %v1121, %v673
      %v1154 = vmul.f32 %v1122, %v674
      %v1155 = vmul.f32 %v1123, %v675
      %v1156 = vmul.f32 %v1124, %v676
      %v1157 = vmul.f32 %v1125, %v677
      %v1158 = vmul.f32 %v1126, %v678
      %v1159 = vmul.f32 %v1127, %v679
      %v1160 = vmul.f32 %v1128, %v680
      %v1161 = vmul.f32 %v1129, %v681
      %v1162 = vmul.f32 %v1130, %v682
      %v1163 = vmul.f32 %v1131, %v683
      %v1164 = vmul.f32 %v1132, %v684
      %v1165 = vmul.f32 %v1133, %v685
      %v1166 = vmul.f32 %v1134, %v686
      %v1167 = vmul.f32 %v1135, 1.442695
      %v1168 = vpow.pop %v1167
      %v1169 = vmul.f32 %v1136, 1.442695
      %v1170 = vpow.pop %v1169
      %v1171 = vmul.f32 %v1137, 1.442695
      %v1172 = vpow.pop %v1171
      %v1173 = vmul.f32 %v1138, 1.442695
      %v1174 = vpow.pop %v1173
      %v1175 = vmul.f32 %v1139, 1.442695
      %v1176 = vpow.pop %v1175
      %v1177 = vmul.f32 %v1140, 1.442695
      %v1178 = vpow.pop %v1177
      %v1179 = vmul.f32 %v1141, 1.442695
      %v1180 = vpow.pop %v1179
      %v1181 = vmul.f32 %v1142, 1.442695
      %v1182 = vpow.pop %v1181
      %v1183 = vmul.f32 %v1143, 1.442695
      %v1184 = vpow.pop %v1183
      %v1185 = vmul.f32 %v1144, 1.442695
      %v1186 = vpow.pop %v1185
      %v1187 = vmul.f32 %v1145, 1.442695
      %v1188 = vpow.pop %v1187
      %v1189 = vmul.f32 %v1146, 1.442695
      %v1190 = vpow.pop %v1189
      %v1191 = vmul.f32 %v1147, 1.442695
      %v1192 = vpow.pop %v1191
      %v1193 = vmul.f32 %v1148, 1.442695
      %v1194 = vpow.pop %v1193
      %v1195 = vmul.f32 %v1149, 1.442695
      %v1196 = vpow.pop %v1195
      %v1197 = vmul.f32 %v1150, 1.442695
      %v1198 = vpow.pop %v1197
      %v1199 = vmul.f32 %v1151, 1.442695
      %v1200 = vpow.pop %v1199
      %v1201 = vmul.f32 %v1152, 1.442695
      %v1202 = vpow.pop %v1201
      %v1203 = vmul.f32 %v1153, 1.442695
      %v1204 = vpow.pop %v1203
      %v1205 = vmul.f32 %v1154, 1.442695
      %v1206 = vpow.pop %v1205
      %v1207 = vmul.f32 %v1155, 1.442695
      %v1208 = vpow.pop %v1207
      %v1209 = vmul.f32 %v1156, 1.442695
      %v1210 = vpow.pop %v1209
      %v1211 = vmul.f32 %v1157, 1.442695
      %v1212 = vpow.pop %v1211
      %v1213 = vmul.f32 %v1158, 1.442695
      %v1214 = vpow.pop %v1213
      %v1215 = vmul.f32 %v1159, 1.442695
      %v1216 = vpow.pop %v1215
      %v1217 = vmul.f32 %v1160, 1.442695
      %v1218 = vpow.pop %v1217
      %v1219 = vmul.f32 %v1161, 1.442695
      %v1220 = vpow.pop %v1219
      %v1221 = vmul.f32 %v1162, 1.442695
      %v1222 = vpow.pop %v1221
      %v1223 = vmul.f32 %v1163, 1.442695
      %v1224 = vpow.pop %v1223
      %v1225 = vmul.f32 %v1164, 1.442695
      %v1226 = vpow.pop %v1225
      %v1227 = vmul.f32 %v1165, 1.442695
      %v1228 = vpow.pop %v1227
      %v1229 = vmul.f32 %v1166, 1.442695
      %v1230 = vpow.pop %v1229
      %v1231 = vmul.f32 %v1071, %v1168
      %v1232 = vmul.f32 %v1072, %v1170
      %v1233 = vmul.f32 %v1073, %v1172
      %v1234 = vmul.f32 %v1074, %v1174
      %v1235 = vmul.f32 %v1075, %v1176
      %v1236 = vmul.f32 %v1076, %v1178
      %v1237 = vmul.f32 %v1077, %v1180
      %v1238 = vmul.f32 %v1078, %v1182
      %v1239 = vmul.f32 %v1079, %v1184
      %v1240 = vmul.f32 %v1080, %v1186
      %v1241 = vmul.f32 %v1081, %v1188
      %v1242 = vmul.f32 %v1082, %v1190
      %v1243 = vmul.f32 %v1083, %v1192
      %v1244 = vmul.f32 %v1084, %v1194
      %v1245 = vmul.f32 %v1085, %v1196
      %v1246 = vmul.f32 %v1086, %v1198
      %v1247 = vmul.f32 %v1087, %v1200
      %v1248 = vmul.f32 %v1088, %v1202
      %v1249 = vmul.f32 %v1089, %v1204
      %v1250 = vmul.f32 %v1090, %v1206
      %v1251 = vmul.f32 %v1091, %v1208
      %v1252 = vmul.f32 %v1092, %v1210
      %v1253 = vmul.f32 %v1093, %v1212
      %v1254 = vmul.f32 %v1094, %v1214
      %v1255 = vmul.f32 %v1095, %v1216
      %v1256 = vmul.f32 %v1096, %v1218
      %v1257 = vmul.f32 %v1097, %v1220
      %v1258 = vmul.f32 %v1098, %v1222
      %v1259 = vmul.f32 %v1099, %v1224
      %v1260 = vmul.f32 %v1100, %v1226
      %v1261 = vmul.f32 %v1101, %v1228
      %v1262 = vmul.f32 %v1102, %v1230
      %v1263 = vsub.f32 1.0, %v1231
      %v1264 = vsub.f32 1.0, %v1232
      %v1265 = vsub.f32 1.0, %v1233
      %v1266 = vsub.f32 1.0, %v1234
      %v1267 = vsub.f32 1.0, %v1235
      %v1268 = vsub.f32 1.0, %v1236
      %v1269 = vsub.f32 1.0, %v1237
      %v1270 = vsub.f32 1.0, %v1238
      %v1271 = vsub.f32 1.0, %v1239
      %v1272 = vsub.f32 1.0, %v1240
      %v1273 = vsub.f32 1.0, %v1241
      %v1274 = vsub.f32 1.0, %v1242
      %v1275 = vsub.f32 1.0, %v1243
      %v1276 = vsub.f32 1.0, %v1244
      %v1277 = vsub.f32 1.0, %v1245
      %v1278 = vsub.f32 1.0, %v1246
      %v1279 = vsub.f32 1.0, %v1247
      %v1280 = vsub.f32 1.0, %v1248
      %v1281 = vsub.f32 1.0, %v1249
      %v1282 = vsub.f32 1.0, %v1250
      %v1283 = vsub.f32 1.0, %v1251
      %v1284 = vsub.f32 1.0, %v1252
      %v1285 = vsub.f32 1.0, %v1253
      %v1286 = vsub.f32 1.0, %v1254
      %v1287 = vsub.f32 1.0, %v1255
      %v1288 = vsub.f32 1.0, %v1256
      %v1289 = vsub.f32 1.0, %v1257
      %v1290 = vsub.f32 1.0, %v1258
      %v1291 = vsub.f32 1.0, %v1259
      %v1292 = vsub.f32 1.0, %v1260
      %v1293 = vsub.f32 1.0, %v1261
      %v1294 = vsub.f32 1.0, %v1262
      %vm1295 = vcmp.ge.f32.partialorder %v623, 0.0
      %vm1296 = vcmp.ge.f32.partialorder %v624, 0.0
      %vm1297 = vcmp.ge.f32.partialorder %v625, 0.0
      %vm1298 = vcmp.ge.f32.partialorder %v626, 0.0
      %vm1299 = vcmp.ge.f32.partialorder %v627, 0.0
      %vm1300 = vcmp.ge.f32.partialorder %v628, 0.0
      %vm1301 = vcmp.ge.f32.partialorder %v629, 0.0
      %vm1302 = vcmp.ge.f32.partialorder %v630, 0.0
      %vm1303 = vcmp.ge.f32.partialorder %v631, 0.0
      %vm1304 = vcmp.ge.f32.partialorder %v632, 0.0
      %vm1305 = vcmp.ge.f32.partialorder %v633, 0.0
      %vm1306 = vcmp.ge.f32.partialorder %v634, 0.0
      %vm1307 = vcmp.ge.f32.partialorder %v635, 0.0
      %vm1308 = vcmp.ge.f32.partialorder %v636, 0.0
      %vm1309 = vcmp.ge.f32.partialorder %v637, 0.0
      %vm1310 = vcmp.ge.f32.partialorder %v638, 0.0
      %vm1311 = vcmp.ge.f32.partialorder %v639, 0.0
      %vm1312 = vcmp.ge.f32.partialorder %v640, 0.0
      %vm1313 = vcmp.ge.f32.partialorder %v641, 0.0
      %vm1314 = vcmp.ge.f32.partialorder %v642, 0.0
      %vm1315 = vcmp.ge.f32.partialorder %v643, 0.0
      %vm1316 = vcmp.ge.f32.partialorder %v644, 0.0
      %vm1317 = vcmp.ge.f32.partialorder %v645, 0.0
      %vm1318 = vcmp.ge.f32.partialorder %v646, 0.0
      %vm1319 = vcmp.ge.f32.partialorder %v647, 0.0
      %vm1320 = vcmp.ge.f32.partialorder %v648, 0.0
      %vm1321 = vcmp.ge.f32.partialorder %v649, 0.0
      %vm1322 = vcmp.ge.f32.partialorder %v650, 0.0
      %vm1323 = vcmp.ge.f32.partialorder %v651, 0.0
      %vm1324 = vcmp.ge.f32.partialorder %v652, 0.0
      %vm1325 = vcmp.ge.f32.partialorder %v653, 0.0
      %vm1326 = vcmp.ge.f32.partialorder %v654, 0.0
      %v1327 = vsub.f32 0.0, %v1263
      %v1328 = vsub.f32 0.0, %v1264
      %v1329 = vsub.f32 0.0, %v1265
      %v1330 = vsub.f32 0.0, %v1266
      %v1331 = vsub.f32 0.0, %v1267
      %v1332 = vsub.f32 0.0, %v1268
      %v1333 = vsub.f32 0.0, %v1269
      %v1334 = vsub.f32 0.0, %v1270
      %v1335 = vsub.f32 0.0, %v1271
      %v1336 = vsub.f32 0.0, %v1272
      %v1337 = vsub.f32 0.0, %v1273
      %v1338 = vsub.f32 0.0, %v1274
      %v1339 = vsub.f32 0.0, %v1275
      %v1340 = vsub.f32 0.0, %v1276
      %v1341 = vsub.f32 0.0, %v1277
      %v1342 = vsub.f32 0.0, %v1278
      %v1343 = vsub.f32 0.0, %v1279
      %v1344 = vsub.f32 0.0, %v1280
      %v1345 = vsub.f32 0.0, %v1281
      %v1346 = vsub.f32 0.0, %v1282
      %v1347 = vsub.f32 0.0, %v1283
      %v1348 = vsub.f32 0.0, %v1284
      %v1349 = vsub.f32 0.0, %v1285
      %v1350 = vsub.f32 0.0, %v1286
      %v1351 = vsub.f32 0.0, %v1287
      %v1352 = vsub.f32 0.0, %v1288
      %v1353 = vsub.f32 0.0, %v1289
      %v1354 = vsub.f32 0.0, %v1290
      %v1355 = vsub.f32 0.0, %v1291
      %v1356 = vsub.f32 0.0, %v1292
      %v1357 = vsub.f32 0.0, %v1293
      %v1358 = vsub.f32 0.0, %v1294
      %v1359 = vsel %vm1295, %v1263, %v1327
      %v1360 = vsel %vm1296, %v1264, %v1328
      %v1361 = vsel %vm1297, %v1265, %v1329
      %v1362 = vsel %vm1298, %v1266, %v1330
      %v1363 = vsel %vm1299, %v1267, %v1331
      %v1364 = vsel %vm1300, %v1268, %v1332
      %v1365 = vsel %vm1301, %v1269, %v1333
      %v1366 = vsel %vm1302, %v1270, %v1334
      %v1367 = vsel %vm1303, %v1271, %v1335
      %v1368 = vsel %vm1304, %v1272, %v1336
      %v1369 = vsel %vm1305, %v1273, %v1337
      %v1370 = vsel %vm1306, %v1274, %v1338
      %v1371 = vsel %vm1307, %v1275, %v1339
      %v1372 = vsel %vm1308, %v1276, %v1340
      %v1373 = vsel %vm1309, %v1277, %v1341
      %v1374 = vsel %vm1310, %v1278, %v1342
      %v1375 = vsel %vm1311, %v1279, %v1343
      %v1376 = vsel %vm1312, %v1280, %v1344
      %v1377 = vsel %vm1313, %v1281, %v1345
      %v1378 = vsel %vm1314, %v1282, %v1346
      %v1379 = vsel %vm1315, %v1283, %v1347
      %v1380 = vsel %vm1316, %v1284, %v1348
      %v1381 = vsel %vm1317, %v1285, %v1349
      %v1382 = vsel %vm1318, %v1286, %v1350
      %v1383 = vsel %vm1319, %v1287, %v1351
      %v1384 = vsel %vm1320, %v1288, %v1352
      %v1385 = vsel %vm1321, %v1289, %v1353
      %v1386 = vsel %vm1322, %v1290, %v1354
      %v1387 = vsel %vm1323, %v1291, %v1355
      %v1388 = vsel %vm1324, %v1292, %v1356
      %v1389 = vsel %vm1325, %v1293, %v1357
      %v1390 = vsel %vm1326, %v1294, %v1358
      %v1391 = vadd.f32 %v1359, 1.0
      %v1392 = vadd.f32 %v1360, 1.0
      %v1393 = vadd.f32 %v1361, 1.0
      %v1394 = vadd.f32 %v1362, 1.0
      %v1395 = vadd.f32 %v1363, 1.0
      %v1396 = vadd.f32 %v1364, 1.0
      %v1397 = vadd.f32 %v1365, 1.0
      %v1398 = vadd.f32 %v1366, 1.0
      %v1399 = vadd.f32 %v1367, 1.0
      %v1400 = vadd.f32 %v1368, 1.0
      %v1401 = vadd.f32 %v1369, 1.0
      %v1402 = vadd.f32 %v1370, 1.0
      %v1403 = vadd.f32 %v1371, 1.0
      %v1404 = vadd.f32 %v1372, 1.0
      %v1405 = vadd.f32 %v1373, 1.0
      %v1406 = vadd.f32 %v1374, 1.0
      %v1407 = vadd.f32 %v1375, 1.0
      %v1408 = vadd.f32 %v1376, 1.0
      %v1409 = vadd.f32 %v1377, 1.0
      %v1410 = vadd.f32 %v1378, 1.0
      %v1411 = vadd.f32 %v1379, 1.0
      %v1412 = vadd.f32 %v1380, 1.0
      %v1413 = vadd.f32 %v1381, 1.0
      %v1414 = vadd.f32 %v1382, 1.0
      %v1415 = vadd.f32 %v1383, 1.0
      %v1416 = vadd.f32 %v1384, 1.0
      %v1417 = vadd.f32 %v1385, 1.0
      %v1418 = vadd.f32 %v1386, 1.0
      %v1419 = vadd.f32 %v1387, 1.0
      %v1420 = vadd.f32 %v1388, 1.0
      %v1421 = vadd.f32 %v1389, 1.0
      %v1422 = vadd.f32 %v1390, 1.0
      %v1423 = vmul.f32 %v591, %v1391
      %v1424 = vmul.f32 %v592, %v1392
      %v1425 = vmul.f32 %v593, %v1393
      %v1426 = vmul.f32 %v594, %v1394
      %v1427 = vmul.f32 %v595, %v1395
      %v1428 = vmul.f32 %v596, %v1396
      %v1429 = vmul.f32 %v597, %v1397
      %v1430 = vmul.f32 %v598, %v1398
      %v1431 = vmul.f32 %v599, %v1399
      %v1432 = vmul.f32 %v600, %v1400
      %v1433 = vmul.f32 %v601, %v1401
      %v1434 = vmul.f32 %v602, %v1402
      %v1435 = vmul.f32 %v603, %v1403
      %v1436 = vmul.f32 %v604, %v1404
      %v1437 = vmul.f32 %v605, %v1405
      %v1438 = vmul.f32 %v606, %v1406
      %v1439 = vmul.f32 %v607, %v1407
      %v1440 = vmul.f32 %v608, %v1408
      %v1441 = vmul.f32 %v609, %v1409
      %v1442 = vmul.f32 %v610, %v1410
      %v1443 = vmul.f32 %v611, %v1411
      %v1444 = vmul.f32 %v612, %v1412
      %v1445 = vmul.f32 %v613, %v1413
      %v1446 = vmul.f32 %v614, %v1414
      %v1447 = vmul.f32 %v615, %v1415
      %v1448 = vmul.f32 %v616, %v1416
      %v1449 = vmul.f32 %v617, %v1417
      %v1450 = vmul.f32 %v618, %v1418
      %v1451 = vmul.f32 %v619, %v1419
      %v1452 = vmul.f32 %v620, %v1420
      %v1453 = vmul.f32 %v621, %v1421
      %v1454 = vmul.f32 %v622, %v1422
      %v1455 = vld [vmem:[%s3] sm:$0xff]
      %v1456 = vld [vmem:[%s3 + $0x8] sm:$0xff]
      %v1457 = vld [vmem:[%s3 + $0x10] sm:$0xff]
      %v1458 = vld [vmem:[%s3 + $0x18] sm:$0xff]
      %v1459 = vld [vmem:[%s4] sm:$0x1]
      %v1461 = vlaneseq
      %v1462 = vshrl.u32 %v1461, 7
      %v1463 = vsub.s32 0, %v1462
      %v1464 = vrot.slane %v1459, %v1463
      %vm1466 = vcmask 261120
      %v1468 = vsel %vm1466, %v1423, 0
      %v1471 = vsel %vm1466, %v1424, 0
      %v1474 = vsel %vm1466, %v1425, 0
      %v1477 = vsel %vm1466, %v1426, 0
      %v1480 = vsel %vm1466, %v1427, 0
      %v1483 = vsel %vm1466, %v1428, 0
      %v1486 = vsel %vm1466, %v1429, 0
      %v1489 = vsel %vm1466, %v1430, 0
      %v1492 = vsel %vm1466, %v1431, 0
      %v1495 = vsel %vm1466, %v1432, 0
      %v1498 = vsel %vm1466, %v1433, 0
      %v1501 = vsel %vm1466, %v1434, 0
      %v1504 = vsel %vm1466, %v1435, 0
      %v1507 = vsel %vm1466, %v1436, 0
      %v1510 = vsel %vm1466, %v1437, 0
      %v1513 = vsel %vm1466, %v1438, 0
      %v1516 = vsel %vm1466, %v1439, 0
      %v1519 = vsel %vm1466, %v1440, 0
      %v1522 = vsel %vm1466, %v1441, 0
      %v1525 = vsel %vm1466, %v1442, 0
      %v1528 = vsel %vm1466, %v1443, 0
      %v1531 = vsel %vm1466, %v1444, 0
      %v1534 = vsel %vm1466, %v1445, 0
      %v1537 = vsel %vm1466, %v1446, 0
      %v1540 = vsel %vm1466, %v1447, 0
      %v1543 = vsel %vm1466, %v1448, 0
      %v1546 = vsel %vm1466, %v1449, 0
      %v1549 = vsel %vm1466, %v1450, 0
      %v1552 = vsel %vm1466, %v1451, 0
      %v1555 = vsel %vm1466, %v1452, 0
      %v1558 = vsel %vm1466, %v1453, 0
      %v1561 = vsel %vm1466, %v1454, 0
      %1563 = vmatprep.subr.mxu0 0.0
      %1564 = vmatpush1.msra.mxu0 0.0
      %1565 = vmatprep.subr.mxu0 0.0
      %1566 = vmatpush1.msra.mxu0 0.0
      %1567 = vmatprep.subr.mxu0 0.0
      %1568 = vmatpush1.msra.mxu0 0.0
      %1569 = vmatprep.subr.mxu0 0.0
      %1570 = vmatpush1.msra.mxu0 0.0
      %1571 = vmatprep.subr.mxu0 0.0
      %1572 = vmatpush1.msra.mxu0 0.0
      %1573 = vmatprep.subr.mxu0 0.0
      %1574 = vmatpush1.msra.mxu0 0.0
      %1575 = vmatprep.subr.mxu0 0.0
      %1576 = vmatpush1.msra.mxu0 0.0
      %1577 = vmatprep.subr.mxu0 0.0
      %1578 = vmatpush1.msra.mxu0 0.0
      %1579 = vmatprep.subr.mxu0 0.0
      %1580 = vmatpush1.msra.mxu0 0.0
      %1581 = vmatprep.subr.mxu0 0.0
      %1582 = vmatpush1.msra.mxu0 0.0
      %1583 = vmatprep.subr.mxu0 0.0
      %1584 = vmatpush1.msra.mxu0 0.0
      %1585 = vmatprep.subr.mxu0 0.0
      %1586 = vmatpush1.msra.mxu0 0.0
      %1587 = vmatprep.subr.mxu0 0.0
      %1588 = vmatpush1.msra.mxu0 %v1458
      %1589 = vmatprep.subr.mxu0 0.0
      %1590 = vmatpush1.msra.mxu0 %v1457
      %1591 = vmatprep.subr.mxu0 0.0
      %1592 = vmatpush1.msra.mxu0 %v1456
      %1593 = vmatprep.subr.mxu0 0.0
      %1594 = vmatpush1.msra.mxu0 %v1455
      %1595 = vmatprep.subr.mxu0 0.0
      %1596 = vmatpush2.msra.mxu0 0.0
      %1597 = vmatprep.subr.mxu0 0.0
      %1598 = vmatpush2.msra.mxu0 0.0
      %1599 = vmatprep.subr.mxu0 0.0
      %1600 = vmatpush2.msra.mxu0 0.0
      %1601 = vmatprep.subr.mxu0 0.0
      %1602 = vmatpush2.msra.mxu0 0.0
      %1603 = vmatprep.subr.mxu0 0.0
      %1604 = vmatpush2.msra.mxu0 0.0
      %1605 = vmatprep.subr.mxu0 0.0
      %1606 = vmatpush2.msra.mxu0 0.0
      %1607 = vmatprep.subr.mxu0 0.0
      %1608 = vmatpush2.msra.mxu0 0.0
      %1609 = vmatprep.subr.mxu0 0.0
      %1610 = vmatpush2.msra.mxu0 0.0
      %1611 = vmatprep.subr.mxu0 0.0
      %1612 = vmatpush2.msra.mxu0 0.0
      %1613 = vmatprep.subr.mxu0 0.0
      %1614 = vmatpush2.msra.mxu0 0.0
      %1615 = vmatprep.subr.mxu0 0.0
      %1616 = vmatpush2.msra.mxu0 0.0
      %1617 = vmatprep.subr.mxu0 0.0
      %1618 = vmatpush2.msra.mxu0 0.0
      %1619 = vmatprep.subr.mxu0 0.0
      %1620 = vmatpush2.msra.mxu0 0.0
      %1621 = vmatprep.subr.mxu0 0.0
      %1622 = vmatpush2.msra.mxu0 0.0
      %1623 = vmatprep.subr.mxu0 0.0
      %1624 = vmatpush2.msra.mxu0 0.0
      %1625 = vmatprep.subr.mxu0 0.0
      %1626 = vmatpush2.msra.mxu0 0.0
      %1627 = vmatprep.mubr.f32.mxu0 0.0
      %1628 = vmatmul.mubr.f32.gmra.mxu0 %v1468
      %v1629 = vpop.f32.mrf.mxu0
      %v1630 = vadd.f32 %v1464, %v1629
      %v1631 = vpop.f32.mrf.mxu0
      %1632 = vmatprep.mubr.f32.mxu0 0.0
      %1633 = vmatmul.mubr.f32.gmra.mxu0 %v1471
      %v1634 = vpop.f32.mrf.mxu0
      %v1635 = vadd.f32 %v1464, %v1634
      %v1636 = vpop.f32.mrf.mxu0
      %1637 = vmatprep.mubr.f32.mxu0 0.0
      %1638 = vmatmul.mubr.f32.gmra.mxu0 %v1474
      %v1639 = vpop.f32.mrf.mxu0
      %v1640 = vadd.f32 %v1464, %v1639
      %v1641 = vpop.f32.mrf.mxu0
      %1642 = vmatprep.mubr.f32.mxu0 0.0
      %1643 = vmatmul.mubr.f32.gmra.mxu0 %v1477
      %v1644 = vpop.f32.mrf.mxu0
      %v1645 = vadd.f32 %v1464, %v1644
      %v1646 = vpop.f32.mrf.mxu0
      %1647 = vmatprep.mubr.f32.mxu0 0.0
      %1648 = vmatmul.mubr.f32.gmra.mxu0 %v1480
      %v1649 = vpop.f32.mrf.mxu0
      %v1650 = vadd.f32 %v1464, %v1649
      %v1651 = vpop.f32.mrf.mxu0
      %1652 = vmatprep.mubr.f32.mxu0 0.0
      %1653 = vmatmul.mubr.f32.gmra.mxu0 %v1483
      %v1654 = vpop.f32.mrf.mxu0
      %v1655 = vadd.f32 %v1464, %v1654
      %v1656 = vpop.f32.mrf.mxu0
      %1657 = vmatprep.mubr.f32.mxu0 0.0
      %1658 = vmatmul.mubr.f32.gmra.mxu0 %v1486
      %v1659 = vpop.f32.mrf.mxu0
      %v1660 = vadd.f32 %v1464, %v1659
      %v1661 = vpop.f32.mrf.mxu0
      %1662 = vmatprep.mubr.f32.mxu0 0.0
      %1663 = vmatmul.mubr.f32.gmra.mxu0 %v1489
      %v1664 = vpop.f32.mrf.mxu0
      %v1665 = vadd.f32 %v1464, %v1664
      %v1666 = vpop.f32.mrf.mxu0
      %1667 = vmatprep.mubr.f32.mxu0 0.0
      %1668 = vmatmul.mubr.f32.gmra.mxu0 %v1492
      %v1669 = vpop.f32.mrf.mxu0
      %v1670 = vadd.f32 %v1464, %v1669
      %v1671 = vpop.f32.mrf.mxu0
      %1672 = vmatprep.mubr.f32.mxu0 0.0
      %1673 = vmatmul.mubr.f32.gmra.mxu0 %v1495
      %v1674 = vpop.f32.mrf.mxu0
      %v1675 = vadd.f32 %v1464, %v1674
      %v1676 = vpop.f32.mrf.mxu0
      %1677 = vmatprep.mubr.f32.mxu0 0.0
      %1678 = vmatmul.mubr.f32.gmra.mxu0 %v1498
      %v1679 = vpop.f32.mrf.mxu0
      %v1680 = vadd.f32 %v1464, %v1679
      %v1681 = vpop.f32.mrf.mxu0
      %1682 = vmatprep.mubr.f32.mxu0 0.0
      %1683 = vmatmul.mubr.f32.gmra.mxu0 %v1501
      %v1684 = vpop.f32.mrf.mxu0
      %v1685 = vadd.f32 %v1464, %v1684
      %v1686 = vpop.f32.mrf.mxu0
      %1687 = vmatprep.mubr.f32.mxu0 0.0
      %1688 = vmatmul.mubr.f32.gmra.mxu0 %v1504
      %v1689 = vpop.f32.mrf.mxu0
      %v1690 = vadd.f32 %v1464, %v1689
      %v1691 = vpop.f32.mrf.mxu0
      %1692 = vmatprep.mubr.f32.mxu0 0.0
      %1693 = vmatmul.mubr.f32.gmra.mxu0 %v1507
      %v1694 = vpop.f32.mrf.mxu0
      %v1695 = vadd.f32 %v1464, %v1694
      %v1696 = vpop.f32.mrf.mxu0
      %1697 = vmatprep.mubr.f32.mxu0 0.0
      %1698 = vmatmul.mubr.f32.gmra.mxu0 %v1510
      %v1699 = vpop.f32.mrf.mxu0
      %v1700 = vadd.f32 %v1464, %v1699
      %v1701 = vpop.f32.mrf.mxu0
      %1702 = vmatprep.mubr.f32.mxu0 0.0
      %1703 = vmatmul.mubr.f32.gmra.mxu0 %v1513
      %v1704 = vpop.f32.mrf.mxu0
      %v1705 = vadd.f32 %v1464, %v1704
      %v1706 = vpop.f32.mrf.mxu0
      %1707 = vmatprep.mubr.f32.mxu0 0.0
      %1708 = vmatmul.mubr.f32.gmra.mxu0 %v1516
      %v1709 = vpop.f32.mrf.mxu0
      %v1710 = vadd.f32 %v1464, %v1709
      %v1711 = vpop.f32.mrf.mxu0
      %1712 = vmatprep.mubr.f32.mxu0 0.0
      %1713 = vmatmul.mubr.f32.gmra.mxu0 %v1519
      %v1714 = vpop.f32.mrf.mxu0
      %v1715 = vadd.f32 %v1464, %v1714
      %v1716 = vpop.f32.mrf.mxu0
      %1717 = vmatprep.mubr.f32.mxu0 0.0
      %1718 = vmatmul.mubr.f32.gmra.mxu0 %v1522
      %v1719 = vpop.f32.mrf.mxu0
      %v1720 = vadd.f32 %v1464, %v1719
      %v1721 = vpop.f32.mrf.mxu0
      %1722 = vmatprep.mubr.f32.mxu0 0.0
      %1723 = vmatmul.mubr.f32.gmra.mxu0 %v1525
      %v1724 = vpop.f32.mrf.mxu0
      %v1725 = vadd.f32 %v1464, %v1724
      %v1726 = vpop.f32.mrf.mxu0
      %1727 = vmatprep.mubr.f32.mxu0 0.0
      %1728 = vmatmul.mubr.f32.gmra.mxu0 %v1528
      %v1729 = vpop.f32.mrf.mxu0
      %v1730 = vadd.f32 %v1464, %v1729
      %v1731 = vpop.f32.mrf.mxu0
      %1732 = vmatprep.mubr.f32.mxu0 0.0
      %1733 = vmatmul.mubr.f32.gmra.mxu0 %v1531
      %v1734 = vpop.f32.mrf.mxu0
      %v1735 = vadd.f32 %v1464, %v1734
      %v1736 = vpop.f32.mrf.mxu0
      %1737 = vmatprep.mubr.f32.mxu0 0.0
      %1738 = vmatmul.mubr.f32.gmra.mxu0 %v1534
      %v1739 = vpop.f32.mrf.mxu0
      %v1740 = vadd.f32 %v1464, %v1739
      %v1741 = vpop.f32.mrf.mxu0
      %1742 = vmatprep.mubr.f32.mxu0 0.0
      %1743 = vmatmul.mubr.f32.gmra.mxu0 %v1537
      %v1744 = vpop.f32.mrf.mxu0
      %v1745 = vadd.f32 %v1464, %v1744
      %v1746 = vpop.f32.mrf.mxu0
      %1747 = vmatprep.mubr.f32.mxu0 0.0
      %1748 = vmatmul.mubr.f32.gmra.mxu0 %v1540
      %v1749 = vpop.f32.mrf.mxu0
      %v1750 = vadd.f32 %v1464, %v1749
      %v1751 = vpop.f32.mrf.mxu0
      %1752 = vmatprep.mubr.f32.mxu0 0.0
      %1753 = vmatmul.mubr.f32.gmra.mxu0 %v1543
      %v1754 = vpop.f32.mrf.mxu0
      %v1755 = vadd.f32 %v1464, %v1754
      %v1756 = vpop.f32.mrf.mxu0
      %1757 = vmatprep.mubr.f32.mxu0 0.0
      %1758 = vmatmul.mubr.f32.gmra.mxu0 %v1546
      %v1759 = vpop.f32.mrf.mxu0
      %v1760 = vadd.f32 %v1464, %v1759
      %v1761 = vpop.f32.mrf.mxu0
      %1762 = vmatprep.mubr.f32.mxu0 0.0
      %1763 = vmatmul.mubr.f32.gmra.mxu0 %v1549
      %v1764 = vpop.f32.mrf.mxu0
      %v1765 = vadd.f32 %v1464, %v1764
      %v1766 = vpop.f32.mrf.mxu0
      %1767 = vmatprep.mubr.f32.mxu0 0.0
      %1768 = vmatmul.mubr.f32.gmra.mxu0 %v1552
      %v1769 = vpop.f32.mrf.mxu0
      %v1770 = vadd.f32 %v1464, %v1769
      %v1771 = vpop.f32.mrf.mxu0
      %1772 = vmatprep.mubr.f32.mxu0 0.0
      %1773 = vmatmul.mubr.f32.gmra.mxu0 %v1555
      %v1774 = vpop.f32.mrf.mxu0
      %v1775 = vadd.f32 %v1464, %v1774
      %v1776 = vpop.f32.mrf.mxu0
      %1777 = vmatprep.mubr.f32.mxu0 0.0
      %1778 = vmatmul.mubr.f32.gmra.mxu0 %v1558
      %v1779 = vpop.f32.mrf.mxu0
      %v1780 = vadd.f32 %v1464, %v1779
      %v1781 = vpop.f32.mrf.mxu0
      %1782 = vmatprep.mubr.f32.mxu0 0.0
      %1783 = vmatmul.mubr.f32.gmra.mxu0 %v1561
      %v1784 = vpop.f32.mrf.mxu0
      %v1785 = vadd.f32 %v1464, %v1784
      %v1786 = vpop.f32.mrf.mxu0
      %1787 = vdwg.mxu0
      %vm1788 = vcmask 31744
      %1789 = vst.msk [vmem:[%s226] sm:$0xff] %vm1788, %v1630
      %1790 = vst.msk [vmem:[%s226 + $0x8] sm:$0xff] %vm1788, %v1635
      %1791 = vst.msk [vmem:[%s226 + $0x10] sm:$0xff] %vm1788, %v1640
      %1792 = vst.msk [vmem:[%s226 + $0x18] sm:$0xff] %vm1788, %v1645
      %1793 = vst.msk [vmem:[%s226 + $0x20] sm:$0xff] %vm1788, %v1650
      %1794 = vst.msk [vmem:[%s226 + $0x28] sm:$0xff] %vm1788, %v1655
      %1795 = vst.msk [vmem:[%s226 + $0x30] sm:$0xff] %vm1788, %v1660
      %1796 = vst.msk [vmem:[%s226 + $0x38] sm:$0xff] %vm1788, %v1665
      %1797 = vst.msk [vmem:[%s226 + $0x40] sm:$0xff] %vm1788, %v1670
      %1798 = vst.msk [vmem:[%s226 + $0x48] sm:$0xff] %vm1788, %v1675
      %1799 = vst.msk [vmem:[%s226 + $0x50] sm:$0xff] %vm1788, %v1680
      %1800 = vst.msk [vmem:[%s226 + $0x58] sm:$0xff] %vm1788, %v1685
      %1801 = vst.msk [vmem:[%s226 + $0x60] sm:$0xff] %vm1788, %v1690
      %1802 = vst.msk [vmem:[%s226 + $0x68] sm:$0xff] %vm1788, %v1695
      %1803 = vst.msk [vmem:[%s226 + $0x70] sm:$0xff] %vm1788, %v1700
      %1804 = vst.msk [vmem:[%s226 + $0x78] sm:$0xff] %vm1788, %v1705
      %1805 = vst.msk [vmem:[%s226 + $0x80] sm:$0xff] %vm1788, %v1710
      %1806 = vst.msk [vmem:[%s226 + $0x88] sm:$0xff] %vm1788, %v1715
      %1807 = vst.msk [vmem:[%s226 + $0x90] sm:$0xff] %vm1788, %v1720
      %1808 = vst.msk [vmem:[%s226 + $0x98] sm:$0xff] %vm1788, %v1725
      %1809 = vst.msk [vmem:[%s226 + $0xa0] sm:$0xff] %vm1788, %v1730
      %1810 = vst.msk [vmem:[%s226 + $0xa8] sm:$0xff] %vm1788, %v1735
      %1811 = vst.msk [vmem:[%s226 + $0xb0] sm:$0xff] %vm1788, %v1740
      %1812 = vst.msk [vmem:[%s226 + $0xb8] sm:$0xff] %vm1788, %v1745
      %1813 = vst.msk [vmem:[%s226 + $0xc0] sm:$0xff] %vm1788, %v1750
      %1814 = vst.msk [vmem:[%s226 + $0xc8] sm:$0xff] %vm1788, %v1755
      %1815 = vst.msk [vmem:[%s226 + $0xd0] sm:$0xff] %vm1788, %v1760
      %1816 = vst.msk [vmem:[%s226 + $0xd8] sm:$0xff] %vm1788, %v1765
      %1817 = vst.msk [vmem:[%s226 + $0xe0] sm:$0xff] %vm1788, %v1770
      %1818 = vst.msk [vmem:[%s226 + $0xe8] sm:$0xff] %vm1788, %v1775
      %1819 = vst.msk [vmem:[%s226 + $0xf0] sm:$0xff] %vm1788, %v1780
      %1820 = vst.msk [vmem:[%s226 + $0xf8] sm:$0xff] %vm1788, %v1785
      %s1821 = smul.u32 32, %s16
      %p1822 = scmp.lt.s32.totalorder %s1821, 63
      %s1823 = scalar_select %p1822, %s1821, 63
      %s1824 = smul.addr %s1823, 8
      %s1825 = scalar_lea.vmem %s5, %s1824
      // Predicated region
      $region41: #{tpu_custom_call.1} parent=39 // pred_check
        %p1826 = pneg %p144
      $region42: #{tpu_custom_call.1} parent=39 // pred_check_branch
        %1828 = sbr.rel (%p1826) target = $region44
      $region43: #{tpu_custom_call.1} parent=39 // pred_region
        %s1829 = smul.u32 32, %s16
      $region44: #{tpu_custom_call.1} parent=39 // pred_fallthru
        _
    $region40: #{tpu_custom_call.1} parent=5 // pred_fallthru
      _
    %p1830 = scmp.le.s32.totalorder 2, %s11
    // Predicated region
    $region45: #{tpu_custom_call.1} parent=5 // pred_check
      %p1831 = pneg %p1830
    $region46: #{tpu_custom_call.1} parent=5 // pred_check_branch
      %1833 = sbr.rel (%p1831) target = $region48
    $region47: #{tpu_custom_call.1} parent=5 // pred_region
      %s1834 = ssub.s32 %s11, 2
      // Predicated region
      $region49: #{tpu_custom_call.1} parent=47 // pred_check
        %p1835 = pneg %p150
      $region50: #{tpu_custom_call.1} parent=47 // pred_check_branch
        %1837 = sbr.rel (%p1835) target = $region52
      $region51: #{tpu_custom_call.1} parent=47 // pred_region
        %s1838 = smul.u32 32, %s17
        %p1839 = scmp.lt.s32.totalorder %s1838, 63
        %s1840 = scalar_select %p1839, %s1838, 63
        %s1841 = smul.addr %s1840, 8
        %s1842 = scalar_lea.vmem %s5, %s1841
      $region52: #{tpu_custom_call.1} parent=47 // pred_fallthru
        _
    $region48: #{tpu_custom_call.1} parent=5 // pred_fallthru
      _
  $region6: #{tpu_custom_call.1} parent=0 // loop_footer
    %s15 = sadd.s32 1, %s11
  $region7: #{tpu_custom_call.1} parent=0 // loop_footer_branch
    %10 = sbr.rel target = $region3
  $region8: #{tpu_custom_call.1} parent=0 // loop_exit
    _

</llo_original>
